<compile_context>
chip_gen: v7x
topology: tpu7x:2x2x1
jax: 0.10.0
libtpu: 0.0.40
codegen_flags: <defaults>
</compile_context>

<pallas_src>
import functools

import numpy as np
import jax
import jax.numpy as jnp
from jax import lax
from jax.experimental import pallas as pl
from jax.experimental.pallas import tpu as pltpu

EPS = 1e-8


def _prelu_gn(v, a, gamma, beta):
    """PReLU (shared slope a) followed by GroupNorm(1, C) over one sample.

    Two-pass statistics (mean, then centered sum of squares) for numerical
    robustness; rsqrt goes to the EUP slot.  v: (C, L); gamma/beta: (C, 1).
    """
    v = jnp.where(v >= 0, v, a * v)
    n = v.shape[0] * v.shape[1]
    mean = jnp.sum(v) * (1.0 / n)
    c = v - mean
    var = jnp.sum(c * c) * (1.0 / n)
    return c * (lax.rsqrt(var + EPS) * gamma) + beta


# SMEM scalar-vector layout (indices into scal_ref):
#   0: prelu1 alpha   1: prelu2 alpha   2: conv2d bias
#   3..6:  inversion_Conv2d weight (4,)
#   7..10: inversion_Conv2d bias   (4,)
#   11..22: conv2d weight (4,3) row-major:  w2d[b, kh] -> 11 + 3*b + kh
def depthconv1d_d_kernel(
    # --- SMEM input ---
    scal_ref,      # (23,) packed scalars (see table above)
    # --- VMEM inputs ---
    x_ref,         # (B, Cin, L)
    w1_ref,        # (H, Cin)     conv1d (1x1) weight
    hvec_ref,      # (H, 8)       [b1, g1, be1, bd, g2, be2, m_top, m_bot]
    wd_ref,        # (H, K)       depthwise conv weight
    wrs_ref,       # (2*Cin, H)   [res_out; skip_out] 1x1 weights stacked
    brs_ref,       # (2*Cin, 1)   [bres; bskip]
    # --- outputs ---
    res_ref,       # (B, Cin, L_out)
    skip_ref,      # (B, Cin, L_out)
    # --- VMEM scratch ---
    z_ref,         # (H, L)               conv2d accumulator
    zpad_ref,      # (H, L + 2*padding)   time-axis zero-padded scratch
    dcv_ref,       # (H, L_out)           depthwise-conv accumulator
    *, B, L, kernel, dilation, padding):

    a1 = scal_ref[0]
    a2 = scal_ref[1]
    b2d = scal_ref[2]

    H = w1_ref.shape[0]
    Cin = res_ref.shape[1]
    K = kernel
    L_out = L + 2 * padding - dilation * (K - 1)

    # packed per-channel vectors (loaded once)
    b1 = hvec_ref[:, 0:1]
    g1 = hvec_ref[:, 1:2]
    be1 = hvec_ref[:, 2:3]
    bd = hvec_ref[:, 3:4]
    g2 = hvec_ref[:, 4:5]
    be2 = hvec_ref[:, 5:6]
    m_top = hvec_ref[:, 6:7]   # 0 at row 0,   else 1  (hides circular wrap)
    m_bot = hvec_ref[:, 7:8]   # 0 at row H-1, else 1

    # bf16 MXU operands (cast once), f32 accumulation everywhere.
    w1_bf = w1_ref[...].astype(jnp.bfloat16)

    # ---- (1)+(2) fused per batch: 1x1 conv -> PReLU/GN -> hidden-axis conv ---
    # Conv2d(4ch->1ch, kernel (3,1), pad (1,0)):
    #   z[h] = b2d + sum_b ( w2d[b,1]*y_b[h] + w2d[b,0]*y_b[h-1] + w2d[b,2]*y_b[h+1] )
    # Shifted rows come from pltpu.roll (XLU); the circularly-wrapped row is
    # zeroed with the one-row masks (no sublane-misaligned scratch traffic).
    for b in range(B):
        yb = jnp.dot(w1_bf, x_ref[b].astype(jnp.bfloat16),
                     preferred_element_type=jnp.float32) + b1
        yb = _prelu_gn(yb, a1, g1, be1)
        w_mid = scal_ref[11 + 3 * b + 1]
        w_up = scal_ref[11 + 3 * b + 0]     # multiplies y_b[h-1]
        w_dn = scal_ref[11 + 3 * b + 2]     # multiplies y_b[h+1]
        contrib = w_mid * yb
        contrib = contrib + (w_up * m_top) * pltpu.roll(yb, shift=1, axis=0)
        contrib = contrib + (w_dn * m_bot) * pltpu.roll(yb, shift=H - 1, axis=0)
        if b == 0:
            z_ref[...] = contrib + b2d      # accumulator init from first tap
        else:
            z_ref[...] += contrib

    # module reuses nonlinearity1 / reg1 here
    z = _prelu_gn(z_ref[...], a1, g1, be1)

    # ---- (3) dilated depthwise conv over time via padded-slice FMAs ----------
    if padding > 0:                          # zero only the halo columns
        zpad_ref[:, 0:padding] = jnp.zeros((H, padding), jnp.float32)
        zpad_ref[:, padding + L:padding + L + padding] = (
            jnp.zeros((H, padding), jnp.float32))
    zpad_ref[:, padding:padding + L] = z

    dcv_ref[...] = wd_ref[:, 0:1] * zpad_ref[:, 0:L_out] + bd   # first tap + bias
    for k in range(1, K):
        s = k * dilation                                        # static offset
        dcv_ref[...] += wd_ref[:, k:k + 1] * zpad_ref[:, s:s + L_out]

    # PReLU2 -> GroupNorm2 (stored back so the step-4 loop re-reads from VMEM)
    dcv_ref[...] = _prelu_gn(dcv_ref[...], a2, g2, be2)

    # ---- (4) 1ch->4ch 1x1 conv, PReLU1, GN1, fused res/skip matmul per batch -
    wrs_bf = wrs_ref[...].astype(jnp.bfloat16)     # (2*Cin, H), hoisted
    brs = brs_ref[...]                             # (2*Cin, 1)
    for o in range(B):
        v = scal_ref[3 + o] * dcv_ref[...] + scal_ref[7 + o]
        v = _prelu_gn(v, a1, g1, be1).astype(jnp.bfloat16)
        rs = jnp.dot(wrs_bf, v, preferred_element_type=jnp.float32) + brs
        res_ref[o] = rs[0:Cin, :]
        skip_ref[o] = rs[Cin:2 * Cin, :]


def depthconv1d_d(x, p, *, kernel, dilation, padding):
    B, Cin, L = x.shape
    assert B == 4, "module's conv2d requires batch == 4"
    H = p["w1"].shape[0]
    K = kernel
    L_out = L + 2 * padding - dilation * (K - 1)

    # ---- pack scalars / per-channel vectors (tiny, host-side) ----------------
    scal = jnp.concatenate([
        jnp.stack([p["a1"], p["a2"], p["b2d"]]),
        p["winv"], p["binv"], p["w2d"].reshape(-1)]).astype(jnp.float32)   # (23,)

    m_top = jnp.ones((H, 1), jnp.float32).at[0, 0].set(0.0)
    m_bot = jnp.ones((H, 1), jnp.float32).at[H - 1, 0].set(0.0)
    hvec = jnp.concatenate(
        [p["b1"], p["g1"], p["be1"], p["bd"], p["g2"], p["be2"], m_top, m_bot],
        axis=1).astype(jnp.float32)                                        # (H, 8)

    wrs = jnp.concatenate([p["wres"], p["wskip"]], axis=0).astype(jnp.float32)
    brs = jnp.concatenate([p["bres"], p["bskip"]], axis=0).astype(jnp.float32)

    smem = pl.BlockSpec(memory_space=pltpu.MemorySpace.SMEM)
    vmem = pl.BlockSpec(memory_space=pltpu.MemorySpace.VMEM)

    kfn = functools.partial(depthconv1d_d_kernel, B=B, L=L, kernel=K,
                            dilation=dilation, padding=padding)

    out_shape = (jax.ShapeDtypeStruct((B, Cin, L_out), jnp.float32),
                 jax.ShapeDtypeStruct((B, Cin, L_out), jnp.float32))

    # derive the VMEM limit from the real footprint (headroom x4), capped so it
    # stays well under v7x's 64 MiB physical VMEM.
    footprint = 4 * (B * Cin * L + H * Cin + H * 8 + H * K + 2 * Cin * H
                     + 2 * Cin + 2 * B * Cin * L_out + H * L
                     + H * (L + 2 * padding) + H * L_out)
    vmem_limit = int(min(48 * 2 ** 20, max(8 * 2 ** 20, 4 * footprint)))

    res, skip = pl.pallas_call(
        kfn,
        out_shape=out_shape,
        in_specs=[smem] + [vmem] * 6,
        out_specs=(vmem, vmem),
        scratch_shapes=[
            pltpu.VMEM((H, L), jnp.float32),
            pltpu.VMEM((H, L + 2 * padding), jnp.float32),
            pltpu.VMEM((H, L_out), jnp.float32),
        ],
        compiler_params=pltpu.CompilerParams(vmem_limit_bytes=vmem_limit),
    )(scal, x.astype(jnp.float32), p["w1"].astype(jnp.float32), hvec,
      p["wd"].astype(jnp.float32), wrs, brs)

    return res, skip


# ------------------------- pure-JAX reference ---------------------------------
def reference(x, p, *, kernel, dilation, padding):
    a1, a2 = p["a1"], p["a2"]
    K = kernel

    def prelu(v, a):
        return jnp.where(v >= 0, v, a * v)

    def gn(v, g, b):
        mean = jnp.mean(v, axis=(-2, -1), keepdims=True)
        var = jnp.mean((v - mean) ** 2, axis=(-2, -1), keepdims=True)
        return (v - mean) / jnp.sqrt(var + EPS) * g + b

    B, Cin, L = x.shape
    H = p["w1"].shape[0]
    L_out = L + 2 * padding - dilation * (K - 1)

    # (1) 1x1 conv, PReLU1, GroupNorm1
    y = jnp.einsum("hc,bcl->bhl", p["w1"], x) + p["b1"][None]
    y = gn(prelu(y, a1), p["g1"][None], p["be1"][None])
    # (2) conv2d (1,4,H,L) -> (1,1,H,L), kernel (3,1), pad (1,0)
    yp = jnp.pad(y, ((0, 0), (1, 1), (0, 0)))
    z = jnp.full((H, L), p["b2d"])
    for c in range(4):
        for kh in range(3):
            z = z + p["w2d"][c, kh] * yp[c, kh:kh + H, :]
    z = gn(prelu(z, a1), p["g1"], p["be1"])
    # (3) depthwise dilated conv over time
    zp = jnp.pad(z, ((0, 0), (padding, padding)))
    d = jnp.zeros((H, L_out)) + p["bd"]
    for k in range(K):
        s = k * dilation
        d = d + p["wd"][:, k:k + 1] * zp[:, s:s + L_out]
    d = gn(prelu(d, a2), p["g2"], p["be2"])
    # (4) 1ch->4ch 1x1 conv2d, PReLU1, GroupNorm1, res/skip
    v = p["winv"][:, None, None] * d[None] + p["binv"][:, None, None]
    v = gn(prelu(v, a1), p["g1"][None], p["be1"][None])
    res = jnp.einsum("ch,bhl->bcl", p["wres"], v) + p["bres"][None]
    skip = jnp.einsum("ch,bhl->bcl", p["wskip"], v) + p["bskip"][None]
    return res, skip


if __name__ == "__main__":
    # Small shapes consistent with the module (batch MUST be 4).
    B, Cin, H, L = 4, 8, 16, 32
    K, DIL, PAD = 3, 1, 1          # kernel, dilation, padding -> L_out == L

    key = jax.random.PRNGKey(0)
    ks = jax.random.split(key, 20)
    nrm = lambda k, s: jax.random.normal(k, s, dtype=jnp.float32)

    params = {
        "w1":   0.3 * nrm(ks[0], (H, Cin)),
        "b1":   0.1 * nrm(ks[1], (H, 1)),
        "g1":   1.0 + 0.1 * nrm(ks[2], (H, 1)),
        "be1":  0.1 * nrm(ks[3], (H, 1)),
        "w2d":  0.3 * nrm(ks[4], (4, 3)),
        "b2d":  0.1 * nrm(ks[5], ()),
        "wd":   0.3 * nrm(ks[6], (H, K)),
        "bd":   0.1 * nrm(ks[7], (H, 1)),
        "g2":   1.0 + 0.1 * nrm(ks[8], (H, 1)),
        "be2":  0.1 * nrm(ks[9], (H, 1)),
        "winv": 0.5 * nrm(ks[10], (4,)),
        "binv": 0.1 * nrm(ks[11], (4,)),
        "wres": 0.3 * nrm(ks[12], (Cin, H)),
        "bres": 0.1 * nrm(ks[13], (Cin, 1)),
        "wskip": 0.3 * nrm(ks[14], (Cin, H)),
        "bskip": 0.1 * nrm(ks[15], (Cin, 1)),
        "a1": jnp.float32(0.25),   # PReLU default init
        "a2": jnp.float32(0.25),
    }
    x = nrm(ks[16], (B, Cin, L))

    res, skip = depthconv1d_d(x, params, kernel=K, dilation=DIL, padding=PAD)
    jax.block_until_ready((res, skip))

    res_ref, skip_ref = reference(x, params, kernel=K, dilation=DIL, padding=PAD)
    # 2e-2 tolerance: the two 1x1-conv matmuls use bf16 MXU operands
    # (f32 accumulation); all GroupNorm / PReLU math stays in f32.
    np.testing.assert_allclose(np.asarray(res), np.asarray(res_ref),
                               rtol=2e-2, atol=2e-2)
    np.testing.assert_allclose(np.asarray(skip), np.asarray(skip_ref),
                               rtol=2e-2, atol=2e-2)

    print("KERNEL_OK")
</pallas_src>

<mosaic_0001>
module attributes {stable_mosaic.version = 11 : i64} {
  func.func @depthconv1d_d_kernel(%arg0: memref<23xf32, #tpu.memory_space<smem>>, %arg1: memref<4x8x32xf32, #tpu.memory_space<vmem>>, %arg2: memref<16x8xf32, #tpu.memory_space<vmem>>, %arg3: memref<16x8xf32, #tpu.memory_space<vmem>>, %arg4: memref<16x3xf32, #tpu.memory_space<vmem>>, %arg5: memref<16x16xf32, #tpu.memory_space<vmem>>, %arg6: memref<16x1xf32, #tpu.memory_space<vmem>>, %arg7: memref<4x8x32xf32, #tpu.memory_space<vmem>>, %arg8: memref<4x8x32xf32, #tpu.memory_space<vmem>>, %arg9: memref<16x32xf32, #tpu.memory_space<vmem>>, %arg10: memref<16x34xf32, #tpu.memory_space<vmem>>, %arg11: memref<16x32xf32, #tpu.memory_space<vmem>>) attributes {dimension_semantics = [], scalar_prefetch = 0 : i64, scratch_operands = 3 : i64, tpu.core_type = #tpu.core_type<tc>} {
    %c0 = arith.constant 0 : index
    %0 = memref.load %arg0[%c0] : memref<23xf32, #tpu.memory_space<smem>>
    %c1 = arith.constant 1 : index
    %1 = memref.load %arg0[%c1] : memref<23xf32, #tpu.memory_space<smem>>
    %c2 = arith.constant 2 : index
    %2 = memref.load %arg0[%c2] : memref<23xf32, #tpu.memory_space<smem>>
    %c0_0 = arith.constant 0 : index
    %c0_1 = arith.constant 0 : index
    %3 = vector.load %arg3[%c0_0, %c0_1] : memref<16x8xf32, #tpu.memory_space<vmem>>, vector<16x1xf32>
    %c0_2 = arith.constant 0 : index
    %c1_3 = arith.constant 1 : index
    %4 = vector.load %arg3[%c0_2, %c1_3] : memref<16x8xf32, #tpu.memory_space<vmem>>, vector<16x1xf32>
    %c0_4 = arith.constant 0 : index
    %c2_5 = arith.constant 2 : index
    %5 = vector.load %arg3[%c0_4, %c2_5] : memref<16x8xf32, #tpu.memory_space<vmem>>, vector<16x1xf32>
    %c0_6 = arith.constant 0 : index
    %c3 = arith.constant 3 : index
    %6 = vector.load %arg3[%c0_6, %c3] : memref<16x8xf32, #tpu.memory_space<vmem>>, vector<16x1xf32>
    %c0_7 = arith.constant 0 : index
    %c4 = arith.constant 4 : index
    %7 = vector.load %arg3[%c0_7, %c4] : memref<16x8xf32, #tpu.memory_space<vmem>>, vector<16x1xf32>
    %c0_8 = arith.constant 0 : index
    %c5 = arith.constant 5 : index
    %8 = vector.load %arg3[%c0_8, %c5] : memref<16x8xf32, #tpu.memory_space<vmem>>, vector<16x1xf32>
    %c0_9 = arith.constant 0 : index
    %c6 = arith.constant 6 : index
    %9 = vector.load %arg3[%c0_9, %c6] : memref<16x8xf32, #tpu.memory_space<vmem>>, vector<16x1xf32>
    %c0_10 = arith.constant 0 : index
    %c7 = arith.constant 7 : index
    %10 = vector.load %arg3[%c0_10, %c7] : memref<16x8xf32, #tpu.memory_space<vmem>>, vector<16x1xf32>
    %c0_11 = arith.constant 0 : index
    %c0_12 = arith.constant 0 : index
    %11 = vector.load %arg2[%c0_11, %c0_12] : memref<16x8xf32, #tpu.memory_space<vmem>>, vector<16x8xf32>
    %12 = arith.truncf %11 : vector<16x8xf32> to vector<16x8xbf16>
    %c0_13 = arith.constant 0 : index
    %c0_14 = arith.constant 0 : index
    %c0_15 = arith.constant 0 : index
    %13 = vector.load %arg1[%c0_13, %c0_14, %c0_15] : memref<4x8x32xf32, #tpu.memory_space<vmem>>, vector<1x8x32xf32>
    %14 = vector.shape_cast %13 : vector<1x8x32xf32> to vector<8x32xf32>
    %15 = arith.truncf %14 : vector<8x32xf32> to vector<8x32xbf16>
    %cst = arith.constant dense<0.000000e+00> : vector<16x32xf32>
    %16 = tpu.matmul %12, %15, %cst {dimension_numbers = #tpu.dot_dimension_numbers<[1], [0], [0], [1], [0, 0, 1, 1], [], []>} : vector<16x8xbf16>, vector<8x32xbf16>, vector<16x32xf32> -> vector<16x32xf32>
    %17 = vector.broadcast %3 : vector<16x1xf32> to vector<16x32xf32>
    %18 = arith.addf %16, %17 : vector<16x32xf32>
    %cst_16 = arith.constant 0.000000e+00 : f32
    %19 = vector.broadcast %cst_16 : f32 to vector<16x32xf32>
    %20 = arith.cmpf oge, %18, %19 : vector<16x32xf32>
    %21 = vector.broadcast %0 : f32 to vector<16x32xf32>
    %22 = arith.mulf %21, %18 : vector<16x32xf32>
    %23 = arith.select %20, %18, %22 : vector<16x32xi1>, vector<16x32xf32>
    %24 = vector.shape_cast %23 : vector<16x32xf32> to vector<1x16x32xf32>
    %cst_17 = arith.constant dense<0.000000e+00> : vector<1xf32>
    %25 = vector.multi_reduction <add>, %24, %cst_17 [1, 2] : vector<1x16x32xf32> to vector<1xf32>
    %26 = vector.shape_cast %25 : vector<1xf32> to vector<1x1x1xf32>
    %27 = vector.extract %26[0, 0, 0] : f32 from vector<1x1x1xf32>
    %cst_18 = arith.constant 0.001953125 : f32
    %28 = arith.mulf %27, %cst_18 : f32
    %29 = vector.broadcast %28 : f32 to vector<16x32xf32>
    %30 = arith.subf %23, %29 : vector<16x32xf32>
    %31 = arith.mulf %30, %30 : vector<16x32xf32>
    %32 = vector.shape_cast %31 : vector<16x32xf32> to vector<1x16x32xf32>
    %cst_19 = arith.constant dense<0.000000e+00> : vector<1xf32>
    %33 = vector.multi_reduction <add>, %32, %cst_19 [1, 2] : vector<1x16x32xf32> to vector<1xf32>
    %34 = vector.shape_cast %33 : vector<1xf32> to vector<1x1x1xf32>
    %35 = vector.extract %34[0, 0, 0] : f32 from vector<1x1x1xf32>
    %cst_20 = arith.constant 0.001953125 : f32
    %36 = arith.mulf %35, %cst_20 : f32
    %cst_21 = arith.constant 9.99999993E-9 : f32
    %37 = arith.addf %36, %cst_21 : f32
    %38 = math.rsqrt %37 : f32
    %39 = vector.broadcast %38 : f32 to vector<16x1xf32>
    %40 = arith.mulf %39, %4 : vector<16x1xf32>
    %41 = vector.broadcast %40 : vector<16x1xf32> to vector<16x32xf32>
    %42 = arith.mulf %30, %41 : vector<16x32xf32>
    %43 = vector.broadcast %5 : vector<16x1xf32> to vector<16x32xf32>
    %44 = arith.addf %42, %43 : vector<16x32xf32>
    %c12 = arith.constant 12 : index
    %45 = memref.load %arg0[%c12] : memref<23xf32, #tpu.memory_space<smem>>
    %c11 = arith.constant 11 : index
    %46 = memref.load %arg0[%c11] : memref<23xf32, #tpu.memory_space<smem>>
    %c13 = arith.constant 13 : index
    %47 = memref.load %arg0[%c13] : memref<23xf32, #tpu.memory_space<smem>>
    %48 = vector.broadcast %45 : f32 to vector<16x32xf32>
    %49 = arith.mulf %48, %44 : vector<16x32xf32>
    %50 = vector.broadcast %46 : f32 to vector<16x1xf32>
    %51 = arith.mulf %50, %9 : vector<16x1xf32>
    %c1_i32 = arith.constant 1 : i32
    %52 = tpu.dynamic_rotate %44 by %c1_i32 dim 0 : vector<16x32xf32>, i32 -> vector<16x32xf32>
    %53 = vector.broadcast %51 : vector<16x1xf32> to vector<16x32xf32>
    %54 = arith.mulf %53, %52 : vector<16x32xf32>
    %55 = arith.addf %49, %54 : vector<16x32xf32>
    %56 = vector.broadcast %47 : f32 to vector<16x1xf32>
    %57 = arith.mulf %56, %10 : vector<16x1xf32>
    %c15_i32 = arith.constant 15 : i32
    %58 = tpu.dynamic_rotate %44 by %c15_i32 dim 0 : vector<16x32xf32>, i32 -> vector<16x32xf32>
    %59 = vector.broadcast %57 : vector<16x1xf32> to vector<16x32xf32>
    %60 = arith.mulf %59, %58 : vector<16x32xf32>
    %61 = arith.addf %55, %60 : vector<16x32xf32>
    %62 = vector.broadcast %2 : f32 to vector<16x32xf32>
    %63 = arith.addf %61, %62 : vector<16x32xf32>
    %c0_22 = arith.constant 0 : index
    %c0_23 = arith.constant 0 : index
    %64 = vector.load %arg9[%c0_22, %c0_23] : memref<16x32xf32, #tpu.memory_space<vmem>>, vector<16x32xf32>
    tpu.vector_store %arg9[%c0_22, %c0_23], %63 {strides = array<i32>} : memref<16x32xf32, #tpu.memory_space<vmem>>, vector<16x32xf32>,
    %c1_24 = arith.constant 1 : index
    %c0_25 = arith.constant 0 : index
    %c0_26 = arith.constant 0 : index
    %65 = vector.load %arg1[%c1_24, %c0_25, %c0_26] : memref<4x8x32xf32, #tpu.memory_space<vmem>>, vector<1x8x32xf32>
    %66 = vector.shape_cast %65 : vector<1x8x32xf32> to vector<8x32xf32>
    %67 = arith.truncf %66 : vector<8x32xf32> to vector<8x32xbf16>
    %cst_27 = arith.constant dense<0.000000e+00> : vector<16x32xf32>
    %68 = tpu.matmul %12, %67, %cst_27 {dimension_numbers = #tpu.dot_dimension_numbers<[1], [0], [0], [1], [0, 0, 1, 1], [], []>} : vector<16x8xbf16>, vector<8x32xbf16>, vector<16x32xf32> -> vector<16x32xf32>
    %69 = vector.broadcast %3 : vector<16x1xf32> to vector<16x32xf32>
    %70 = arith.addf %68, %69 : vector<16x32xf32>
    %cst_28 = arith.constant 0.000000e+00 : f32
    %71 = vector.broadcast %cst_28 : f32 to vector<16x32xf32>
    %72 = arith.cmpf oge, %70, %71 : vector<16x32xf32>
    %73 = vector.broadcast %0 : f32 to vector<16x32xf32>
    %74 = arith.mulf %73, %70 : vector<16x32xf32>
    %75 = arith.select %72, %70, %74 : vector<16x32xi1>, vector<16x32xf32>
    %76 = vector.shape_cast %75 : vector<16x32xf32> to vector<1x16x32xf32>
    %cst_29 = arith.constant dense<0.000000e+00> : vector<1xf32>
    %77 = vector.multi_reduction <add>, %76, %cst_29 [1, 2] : vector<1x16x32xf32> to vector<1xf32>
    %78 = vector.shape_cast %77 : vector<1xf32> to vector<1x1x1xf32>
    %79 = vector.extract %78[0, 0, 0] : f32 from vector<1x1x1xf32>
    %cst_30 = arith.constant 0.001953125 : f32
    %80 = arith.mulf %79, %cst_30 : f32
    %81 = vector.broadcast %80 : f32 to vector<16x32xf32>
    %82 = arith.subf %75, %81 : vector<16x32xf32>
    %83 = arith.mulf %82, %82 : vector<16x32xf32>
    %84 = vector.shape_cast %83 : vector<16x32xf32> to vector<1x16x32xf32>
    %cst_31 = arith.constant dense<0.000000e+00> : vector<1xf32>
    %85 = vector.multi_reduction <add>, %84, %cst_31 [1, 2] : vector<1x16x32xf32> to vector<1xf32>
    %86 = vector.shape_cast %85 : vector<1xf32> to vector<1x1x1xf32>
    %87 = vector.extract %86[0, 0, 0] : f32 from vector<1x1x1xf32>
    %cst_32 = arith.constant 0.001953125 : f32
    %88 = arith.mulf %87, %cst_32 : f32
    %cst_33 = arith.constant 9.99999993E-9 : f32
    %89 = arith.addf %88, %cst_33 : f32
    %90 = math.rsqrt %89 : f32
    %91 = vector.broadcast %90 : f32 to vector<16x1xf32>
    %92 = arith.mulf %91, %4 : vector<16x1xf32>
    %93 = vector.broadcast %92 : vector<16x1xf32> to vector<16x32xf32>
    %94 = arith.mulf %82, %93 : vector<16x32xf32>
    %95 = vector.broadcast %5 : vector<16x1xf32> to vector<16x32xf32>
    %96 = arith.addf %94, %95 : vector<16x32xf32>
    %c15 = arith.constant 15 : index
    %97 = memref.load %arg0[%c15] : memref<23xf32, #tpu.memory_space<smem>>
    %c14 = arith.constant 14 : index
    %98 = memref.load %arg0[%c14] : memref<23xf32, #tpu.memory_space<smem>>
    %c16 = arith.constant 16 : index
    %99 = memref.load %arg0[%c16] : memref<23xf32, #tpu.memory_space<smem>>
    %100 = vector.broadcast %97 : f32 to vector<16x32xf32>
    %101 = arith.mulf %100, %96 : vector<16x32xf32>
    %102 = vector.broadcast %98 : f32 to vector<16x1xf32>
    %103 = arith.mulf %102, %9 : vector<16x1xf32>
    %c1_i32_34 = arith.constant 1 : i32
    %104 = tpu.dynamic_rotate %96 by %c1_i32_34 dim 0 : vector<16x32xf32>, i32 -> vector<16x32xf32>
    %105 = vector.broadcast %103 : vector<16x1xf32> to vector<16x32xf32>
    %106 = arith.mulf %105, %104 : vector<16x32xf32>
    %107 = arith.addf %101, %106 : vector<16x32xf32>
    %108 = vector.broadcast %99 : f32 to vector<16x1xf32>
    %109 = arith.mulf %108, %10 : vector<16x1xf32>
    %c15_i32_35 = arith.constant 15 : i32
    %110 = tpu.dynamic_rotate %96 by %c15_i32_35 dim 0 : vector<16x32xf32>, i32 -> vector<16x32xf32>
    %111 = vector.broadcast %109 : vector<16x1xf32> to vector<16x32xf32>
    %112 = arith.mulf %111, %110 : vector<16x32xf32>
    %113 = arith.addf %107, %112 : vector<16x32xf32>
    %c0_36 = arith.constant 0 : index
    %c0_37 = arith.constant 0 : index
    %114 = vector.load %arg9[%c0_36, %c0_37] : memref<16x32xf32, #tpu.memory_space<vmem>>, vector<16x32xf32>
    %115 = arith.addf %114, %113 : vector<16x32xf32>
    %c0_38 = arith.constant 0 : index
    %c0_39 = arith.constant 0 : index
    %116 = vector.load %arg9[%c0_38, %c0_39] : memref<16x32xf32, #tpu.memory_space<vmem>>, vector<16x32xf32>
    tpu.vector_store %arg9[%c0_38, %c0_39], %115 {strides = array<i32>} : memref<16x32xf32, #tpu.memory_space<vmem>>, vector<16x32xf32>,
    %c2_40 = arith.constant 2 : index
    %c0_41 = arith.constant 0 : index
    %c0_42 = arith.constant 0 : index
    %117 = vector.load %arg1[%c2_40, %c0_41, %c0_42] : memref<4x8x32xf32, #tpu.memory_space<vmem>>, vector<1x8x32xf32>
    %118 = vector.shape_cast %117 : vector<1x8x32xf32> to vector<8x32xf32>
    %119 = arith.truncf %118 : vector<8x32xf32> to vector<8x32xbf16>
    %cst_43 = arith.constant dense<0.000000e+00> : vector<16x32xf32>
    %120 = tpu.matmul %12, %119, %cst_43 {dimension_numbers = #tpu.dot_dimension_numbers<[1], [0], [0], [1], [0, 0, 1, 1], [], []>} : vector<16x8xbf16>, vector<8x32xbf16>, vector<16x32xf32> -> vector<16x32xf32>
    %121 = vector.broadcast %3 : vector<16x1xf32> to vector<16x32xf32>
    %122 = arith.addf %120, %121 : vector<16x32xf32>
    %cst_44 = arith.constant 0.000000e+00 : f32
    %123 = vector.broadcast %cst_44 : f32 to vector<16x32xf32>
    %124 = arith.cmpf oge, %122, %123 : vector<16x32xf32>
    %125 = vector.broadcast %0 : f32 to vector<16x32xf32>
    %126 = arith.mulf %125, %122 : vector<16x32xf32>
    %127 = arith.select %124, %122, %126 : vector<16x32xi1>, vector<16x32xf32>
    %128 = vector.shape_cast %127 : vector<16x32xf32> to vector<1x16x32xf32>
    %cst_45 = arith.constant dense<0.000000e+00> : vector<1xf32>
    %129 = vector.multi_reduction <add>, %128, %cst_45 [1, 2] : vector<1x16x32xf32> to vector<1xf32>
    %130 = vector.shape_cast %129 : vector<1xf32> to vector<1x1x1xf32>
    %131 = vector.extract %130[0, 0, 0] : f32 from vector<1x1x1xf32>
    %cst_46 = arith.constant 0.001953125 : f32
    %132 = arith.mulf %131, %cst_46 : f32
    %133 = vector.broadcast %132 : f32 to vector<16x32xf32>
    %134 = arith.subf %127, %133 : vector<16x32xf32>
    %135 = arith.mulf %134, %134 : vector<16x32xf32>
    %136 = vector.shape_cast %135 : vector<16x32xf32> to vector<1x16x32xf32>
    %cst_47 = arith.constant dense<0.000000e+00> : vector<1xf32>
    %137 = vector.multi_reduction <add>, %136, %cst_47 [1, 2] : vector<1x16x32xf32> to vector<1xf32>
    %138 = vector.shape_cast %137 : vector<1xf32> to vector<1x1x1xf32>
    %139 = vector.extract %138[0, 0, 0] : f32 from vector<1x1x1xf32>
    %cst_48 = arith.constant 0.001953125 : f32
    %140 = arith.mulf %139, %cst_48 : f32
    %cst_49 = arith.constant 9.99999993E-9 : f32
    %141 = arith.addf %140, %cst_49 : f32
    %142 = math.rsqrt %141 : f32
    %143 = vector.broadcast %142 : f32 to vector<16x1xf32>
    %144 = arith.mulf %143, %4 : vector<16x1xf32>
    %145 = vector.broadcast %144 : vector<16x1xf32> to vector<16x32xf32>
    %146 = arith.mulf %134, %145 : vector<16x32xf32>
    %147 = vector.broadcast %5 : vector<16x1xf32> to vector<16x32xf32>
    %148 = arith.addf %146, %147 : vector<16x32xf32>
    %c18 = arith.constant 18 : index
    %149 = memref.load %arg0[%c18] : memref<23xf32, #tpu.memory_space<smem>>
    %c17 = arith.constant 17 : index
    %150 = memref.load %arg0[%c17] : memref<23xf32, #tpu.memory_space<smem>>
    %c19 = arith.constant 19 : index
    %151 = memref.load %arg0[%c19] : memref<23xf32, #tpu.memory_space<smem>>
    %152 = vector.broadcast %149 : f32 to vector<16x32xf32>
    %153 = arith.mulf %152, %148 : vector<16x32xf32>
    %154 = vector.broadcast %150 : f32 to vector<16x1xf32>
    %155 = arith.mulf %154, %9 : vector<16x1xf32>
    %c1_i32_50 = arith.constant 1 : i32
    %156 = tpu.dynamic_rotate %148 by %c1_i32_50 dim 0 : vector<16x32xf32>, i32 -> vector<16x32xf32>
    %157 = vector.broadcast %155 : vector<16x1xf32> to vector<16x32xf32>
    %158 = arith.mulf %157, %156 : vector<16x32xf32>
    %159 = arith.addf %153, %158 : vector<16x32xf32>
    %160 = vector.broadcast %151 : f32 to vector<16x1xf32>
    %161 = arith.mulf %160, %10 : vector<16x1xf32>
    %c15_i32_51 = arith.constant 15 : i32
    %162 = tpu.dynamic_rotate %148 by %c15_i32_51 dim 0 : vector<16x32xf32>, i32 -> vector<16x32xf32>
    %163 = vector.broadcast %161 : vector<16x1xf32> to vector<16x32xf32>
    %164 = arith.mulf %163, %162 : vector<16x32xf32>
    %165 = arith.addf %159, %164 : vector<16x32xf32>
    %c0_52 = arith.constant 0 : index
    %c0_53 = arith.constant 0 : index
    %166 = vector.load %arg9[%c0_52, %c0_53] : memref<16x32xf32, #tpu.memory_space<vmem>>, vector<16x32xf32>
    %167 = arith.addf %166, %165 : vector<16x32xf32>
    %c0_54 = arith.constant 0 : index
    %c0_55 = arith.constant 0 : index
    %168 = vector.load %arg9[%c0_54, %c0_55] : memref<16x32xf32, #tpu.memory_space<vmem>>, vector<16x32xf32>
    tpu.vector_store %arg9[%c0_54, %c0_55], %167 {strides = array<i32>} : memref<16x32xf32, #tpu.memory_space<vmem>>, vector<16x32xf32>,
    %c3_56 = arith.constant 3 : index
    %c0_57 = arith.constant 0 : index
    %c0_58 = arith.constant 0 : index
    %169 = vector.load %arg1[%c3_56, %c0_57, %c0_58] : memref<4x8x32xf32, #tpu.memory_space<vmem>>, vector<1x8x32xf32>
    %170 = vector.shape_cast %169 : vector<1x8x32xf32> to vector<8x32xf32>
    %171 = arith.truncf %170 : vector<8x32xf32> to vector<8x32xbf16>
    %cst_59 = arith.constant dense<0.000000e+00> : vector<16x32xf32>
    %172 = tpu.matmul %12, %171, %cst_59 {dimension_numbers = #tpu.dot_dimension_numbers<[1], [0], [0], [1], [0, 0, 1, 1], [], []>} : vector<16x8xbf16>, vector<8x32xbf16>, vector<16x32xf32> -> vector<16x32xf32>
    %173 = vector.broadcast %3 : vector<16x1xf32> to vector<16x32xf32>
    %174 = arith.addf %172, %173 : vector<16x32xf32>
    %cst_60 = arith.constant 0.000000e+00 : f32
    %175 = vector.broadcast %cst_60 : f32 to vector<16x32xf32>
    %176 = arith.cmpf oge, %174, %175 : vector<16x32xf32>
    %177 = vector.broadcast %0 : f32 to vector<16x32xf32>
    %178 = arith.mulf %177, %174 : vector<16x32xf32>
    %179 = arith.select %176, %174, %178 : vector<16x32xi1>, vector<16x32xf32>
    %180 = vector.shape_cast %179 : vector<16x32xf32> to vector<1x16x32xf32>
    %cst_61 = arith.constant dense<0.000000e+00> : vector<1xf32>
    %181 = vector.multi_reduction <add>, %180, %cst_61 [1, 2] : vector<1x16x32xf32> to vector<1xf32>
    %182 = vector.shape_cast %181 : vector<1xf32> to vector<1x1x1xf32>
    %183 = vector.extract %182[0, 0, 0] : f32 from vector<1x1x1xf32>
    %cst_62 = arith.constant 0.001953125 : f32
    %184 = arith.mulf %183, %cst_62 : f32
    %185 = vector.broadcast %184 : f32 to vector<16x32xf32>
    %186 = arith.subf %179, %185 : vector<16x32xf32>
    %187 = arith.mulf %186, %186 : vector<16x32xf32>
    %188 = vector.shape_cast %187 : vector<16x32xf32> to vector<1x16x32xf32>
    %cst_63 = arith.constant dense<0.000000e+00> : vector<1xf32>
    %189 = vector.multi_reduction <add>, %188, %cst_63 [1, 2] : vector<1x16x32xf32> to vector<1xf32>
    %190 = vector.shape_cast %189 : vector<1xf32> to vector<1x1x1xf32>
    %191 = vector.extract %190[0, 0, 0] : f32 from vector<1x1x1xf32>
    %cst_64 = arith.constant 0.001953125 : f32
    %192 = arith.mulf %191, %cst_64 : f32
    %cst_65 = arith.constant 9.99999993E-9 : f32
    %193 = arith.addf %192, %cst_65 : f32
    %194 = math.rsqrt %193 : f32
    %195 = vector.broadcast %194 : f32 to vector<16x1xf32>
    %196 = arith.mulf %195, %4 : vector<16x1xf32>
    %197 = vector.broadcast %196 : vector<16x1xf32> to vector<16x32xf32>
    %198 = arith.mulf %186, %197 : vector<16x32xf32>
    %199 = vector.broadcast %5 : vector<16x1xf32> to vector<16x32xf32>
    %200 = arith.addf %198, %199 : vector<16x32xf32>
    %c21 = arith.constant 21 : index
    %201 = memref.load %arg0[%c21] : memref<23xf32, #tpu.memory_space<smem>>
    %c20 = arith.constant 20 : index
    %202 = memref.load %arg0[%c20] : memref<23xf32, #tpu.memory_space<smem>>
    %c22 = arith.constant 22 : index
    %203 = memref.load %arg0[%c22] : memref<23xf32, #tpu.memory_space<smem>>
    %204 = vector.broadcast %201 : f32 to vector<16x32xf32>
    %205 = arith.mulf %204, %200 : vector<16x32xf32>
    %206 = vector.broadcast %202 : f32 to vector<16x1xf32>
    %207 = arith.mulf %206, %9 : vector<16x1xf32>
    %c1_i32_66 = arith.constant 1 : i32
    %208 = tpu.dynamic_rotate %200 by %c1_i32_66 dim 0 : vector<16x32xf32>, i32 -> vector<16x32xf32>
    %209 = vector.broadcast %207 : vector<16x1xf32> to vector<16x32xf32>
    %210 = arith.mulf %209, %208 : vector<16x32xf32>
    %211 = arith.addf %205, %210 : vector<16x32xf32>
    %212 = vector.broadcast %203 : f32 to vector<16x1xf32>
    %213 = arith.mulf %212, %10 : vector<16x1xf32>
    %c15_i32_67 = arith.constant 15 : i32
    %214 = tpu.dynamic_rotate %200 by %c15_i32_67 dim 0 : vector<16x32xf32>, i32 -> vector<16x32xf32>
    %215 = vector.broadcast %213 : vector<16x1xf32> to vector<16x32xf32>
    %216 = arith.mulf %215, %214 : vector<16x32xf32>
    %217 = arith.addf %211, %216 : vector<16x32xf32>
    %c0_68 = arith.constant 0 : index
    %c0_69 = arith.constant 0 : index
    %218 = vector.load %arg9[%c0_68, %c0_69] : memref<16x32xf32, #tpu.memory_space<vmem>>, vector<16x32xf32>
    %219 = arith.addf %218, %217 : vector<16x32xf32>
    %c0_70 = arith.constant 0 : index
    %c0_71 = arith.constant 0 : index
    %220 = vector.load %arg9[%c0_70, %c0_71] : memref<16x32xf32, #tpu.memory_space<vmem>>, vector<16x32xf32>
    tpu.vector_store %arg9[%c0_70, %c0_71], %219 {strides = array<i32>} : memref<16x32xf32, #tpu.memory_space<vmem>>, vector<16x32xf32>,
    %c0_72 = arith.constant 0 : index
    %c0_73 = arith.constant 0 : index
    %221 = vector.load %arg9[%c0_72, %c0_73] : memref<16x32xf32, #tpu.memory_space<vmem>>, vector<16x32xf32>
    %cst_74 = arith.constant 0.000000e+00 : f32
    %222 = vector.broadcast %cst_74 : f32 to vector<16x32xf32>
    %223 = arith.cmpf oge, %221, %222 : vector<16x32xf32>
    %224 = vector.broadcast %0 : f32 to vector<16x32xf32>
    %225 = arith.mulf %224, %221 : vector<16x32xf32>
    %226 = arith.select %223, %221, %225 : vector<16x32xi1>, vector<16x32xf32>
    %227 = vector.shape_cast %226 : vector<16x32xf32> to vector<1x16x32xf32>
    %cst_75 = arith.constant dense<0.000000e+00> : vector<1xf32>
    %228 = vector.multi_reduction <add>, %227, %cst_75 [1, 2] : vector<1x16x32xf32> to vector<1xf32>
    %229 = vector.shape_cast %228 : vector<1xf32> to vector<1x1x1xf32>
    %230 = vector.extract %229[0, 0, 0] : f32 from vector<1x1x1xf32>
    %cst_76 = arith.constant 0.001953125 : f32
    %231 = arith.mulf %230, %cst_76 : f32
    %232 = vector.broadcast %231 : f32 to vector<16x32xf32>
    %233 = arith.subf %226, %232 : vector<16x32xf32>
    %234 = arith.mulf %233, %233 : vector<16x32xf32>
    %235 = vector.shape_cast %234 : vector<16x32xf32> to vector<1x16x32xf32>
    %cst_77 = arith.constant dense<0.000000e+00> : vector<1xf32>
    %236 = vector.multi_reduction <add>, %235, %cst_77 [1, 2] : vector<1x16x32xf32> to vector<1xf32>
    %237 = vector.shape_cast %236 : vector<1xf32> to vector<1x1x1xf32>
    %238 = vector.extract %237[0, 0, 0] : f32 from vector<1x1x1xf32>
    %cst_78 = arith.constant 0.001953125 : f32
    %239 = arith.mulf %238, %cst_78 : f32
    %cst_79 = arith.constant 9.99999993E-9 : f32
    %240 = arith.addf %239, %cst_79 : f32
    %241 = math.rsqrt %240 : f32
    %242 = vector.broadcast %241 : f32 to vector<16x1xf32>
    %243 = arith.mulf %242, %4 : vector<16x1xf32>
    %244 = vector.broadcast %243 : vector<16x1xf32> to vector<16x32xf32>
    %245 = arith.mulf %233, %244 : vector<16x32xf32>
    %246 = vector.broadcast %5 : vector<16x1xf32> to vector<16x32xf32>
    %247 = arith.addf %245, %246 : vector<16x32xf32>
    %cst_80 = arith.constant 0.000000e+00 : f32
    %248 = vector.broadcast %cst_80 : f32 to vector<16x1xf32>
    %c0_81 = arith.constant 0 : index
    %c0_82 = arith.constant 0 : index
    %249 = vector.load %arg10[%c0_81, %c0_82] : memref<16x34xf32, #tpu.memory_space<vmem>>, vector<16x1xf32>
    tpu.vector_store %arg10[%c0_81, %c0_82], %248 {strides = array<i32>} : memref<16x34xf32, #tpu.memory_space<vmem>>, vector<16x1xf32>,
    %cst_83 = arith.constant 0.000000e+00 : f32
    %250 = vector.broadcast %cst_83 : f32 to vector<16x1xf32>
    %c0_84 = arith.constant 0 : index
    %c33 = arith.constant 33 : index
    %251 = vector.load %arg10[%c0_84, %c33] : memref<16x34xf32, #tpu.memory_space<vmem>>, vector<16x1xf32>
    tpu.vector_store %arg10[%c0_84, %c33], %250 {strides = array<i32>} : memref<16x34xf32, #tpu.memory_space<vmem>>, vector<16x1xf32>,
    %c0_85 = arith.constant 0 : index
    %c1_86 = arith.constant 1 : index
    %252 = vector.load %arg10[%c0_85, %c1_86] : memref<16x34xf32, #tpu.memory_space<vmem>>, vector<16x32xf32>
    tpu.vector_store %arg10[%c0_85, %c1_86], %247 {strides = array<i32>} : memref<16x34xf32, #tpu.memory_space<vmem>>, vector<16x32xf32>,
    %c0_87 = arith.constant 0 : index
    %c0_88 = arith.constant 0 : index
    %253 = vector.load %arg4[%c0_87, %c0_88] : memref<16x3xf32, #tpu.memory_space<vmem>>, vector<16x1xf32>
    %c0_89 = arith.constant 0 : index
    %c0_90 = arith.constant 0 : index
    %254 = vector.load %arg10[%c0_89, %c0_90] : memref<16x34xf32, #tpu.memory_space<vmem>>, vector<16x32xf32>
    %255 = vector.broadcast %253 : vector<16x1xf32> to vector<16x32xf32>
    %256 = arith.mulf %255, %254 : vector<16x32xf32>
    %257 = vector.broadcast %6 : vector<16x1xf32> to vector<16x32xf32>
    %258 = arith.addf %256, %257 : vector<16x32xf32>
    %c0_91 = arith.constant 0 : index
    %c0_92 = arith.constant 0 : index
    %259 = vector.load %arg11[%c0_91, %c0_92] : memref<16x32xf32, #tpu.memory_space<vmem>>, vector<16x32xf32>
    tpu.vector_store %arg11[%c0_91, %c0_92], %258 {strides = array<i32>} : memref<16x32xf32, #tpu.memory_space<vmem>>, vector<16x32xf32>,
    %c0_93 = arith.constant 0 : index
    %c0_94 = arith.constant 0 : index
    %260 = vector.load %arg11[%c0_93, %c0_94] : memref<16x32xf32, #tpu.memory_space<vmem>>, vector<16x32xf32>
    %c0_95 = arith.constant 0 : index
    %c1_96 = arith.constant 1 : index
    %261 = vector.load %arg4[%c0_95, %c1_96] : memref<16x3xf32, #tpu.memory_space<vmem>>, vector<16x1xf32>
    %c0_97 = arith.constant 0 : index
    %c1_98 = arith.constant 1 : index
    %262 = vector.load %arg10[%c0_97, %c1_98] : memref<16x34xf32, #tpu.memory_space<vmem>>, vector<16x32xf32>
    %263 = vector.broadcast %261 : vector<16x1xf32> to vector<16x32xf32>
    %264 = arith.mulf %263, %262 : vector<16x32xf32>
    %265 = arith.addf %260, %264 : vector<16x32xf32>
    %c0_99 = arith.constant 0 : index
    %c0_100 = arith.constant 0 : index
    %266 = vector.load %arg11[%c0_99, %c0_100] : memref<16x32xf32, #tpu.memory_space<vmem>>, vector<16x32xf32>
    tpu.vector_store %arg11[%c0_99, %c0_100], %265 {strides = array<i32>} : memref<16x32xf32, #tpu.memory_space<vmem>>, vector<16x32xf32>,
    %c0_101 = arith.constant 0 : index
    %c0_102 = arith.constant 0 : index
    %267 = vector.load %arg11[%c0_101, %c0_102] : memref<16x32xf32, #tpu.memory_space<vmem>>, vector<16x32xf32>
    %c0_103 = arith.constant 0 : index
    %c2_104 = arith.constant 2 : index
    %268 = vector.load %arg4[%c0_103, %c2_104] : memref<16x3xf32, #tpu.memory_space<vmem>>, vector<16x1xf32>
    %c0_105 = arith.constant 0 : index
    %c2_106 = arith.constant 2 : index
    %269 = vector.load %arg10[%c0_105, %c2_106] : memref<16x34xf32, #tpu.memory_space<vmem>>, vector<16x32xf32>
    %270 = vector.broadcast %268 : vector<16x1xf32> to vector<16x32xf32>
    %271 = arith.mulf %270, %269 : vector<16x32xf32>
    %272 = arith.addf %267, %271 : vector<16x32xf32>
    %c0_107 = arith.constant 0 : index
    %c0_108 = arith.constant 0 : index
    %273 = vector.load %arg11[%c0_107, %c0_108] : memref<16x32xf32, #tpu.memory_space<vmem>>, vector<16x32xf32>
    tpu.vector_store %arg11[%c0_107, %c0_108], %272 {strides = array<i32>} : memref<16x32xf32, #tpu.memory_space<vmem>>, vector<16x32xf32>,
    %c0_109 = arith.constant 0 : index
    %c0_110 = arith.constant 0 : index
    %274 = vector.load %arg11[%c0_109, %c0_110] : memref<16x32xf32, #tpu.memory_space<vmem>>, vector<16x32xf32>
    %cst_111 = arith.constant 0.000000e+00 : f32
    %275 = vector.broadcast %cst_111 : f32 to vector<16x32xf32>
    %276 = arith.cmpf oge, %274, %275 : vector<16x32xf32>
    %277 = vector.broadcast %1 : f32 to vector<16x32xf32>
    %278 = arith.mulf %277, %274 : vector<16x32xf32>
    %279 = arith.select %276, %274, %278 : vector<16x32xi1>, vector<16x32xf32>
    %280 = vector.shape_cast %279 : vector<16x32xf32> to vector<1x16x32xf32>
    %cst_112 = arith.constant dense<0.000000e+00> : vector<1xf32>
    %281 = vector.multi_reduction <add>, %280, %cst_112 [1, 2] : vector<1x16x32xf32> to vector<1xf32>
    %282 = vector.shape_cast %281 : vector<1xf32> to vector<1x1x1xf32>
    %283 = vector.extract %282[0, 0, 0] : f32 from vector<1x1x1xf32>
    %cst_113 = arith.constant 0.001953125 : f32
    %284 = arith.mulf %283, %cst_113 : f32
    %285 = vector.broadcast %284 : f32 to vector<16x32xf32>
    %286 = arith.subf %279, %285 : vector<16x32xf32>
    %287 = arith.mulf %286, %286 : vector<16x32xf32>
    %288 = vector.shape_cast %287 : vector<16x32xf32> to vector<1x16x32xf32>
    %cst_114 = arith.constant dense<0.000000e+00> : vector<1xf32>
    %289 = vector.multi_reduction <add>, %288, %cst_114 [1, 2] : vector<1x16x32xf32> to vector<1xf32>
    %290 = vector.shape_cast %289 : vector<1xf32> to vector<1x1x1xf32>
    %291 = vector.extract %290[0, 0, 0] : f32 from vector<1x1x1xf32>
    %cst_115 = arith.constant 0.001953125 : f32
    %292 = arith.mulf %291, %cst_115 : f32
    %cst_116 = arith.constant 9.99999993E-9 : f32
    %293 = arith.addf %292, %cst_116 : f32
    %294 = math.rsqrt %293 : f32
    %295 = vector.broadcast %294 : f32 to vector<16x1xf32>
    %296 = arith.mulf %295, %7 : vector<16x1xf32>
    %297 = vector.broadcast %296 : vector<16x1xf32> to vector<16x32xf32>
    %298 = arith.mulf %286, %297 : vector<16x32xf32>
    %299 = vector.broadcast %8 : vector<16x1xf32> to vector<16x32xf32>
    %300 = arith.addf %298, %299 : vector<16x32xf32>
    %c0_117 = arith.constant 0 : index
    %c0_118 = arith.constant 0 : index
    %301 = vector.load %arg11[%c0_117, %c0_118] : memref<16x32xf32, #tpu.memory_space<vmem>>, vector<16x32xf32>
    tpu.vector_store %arg11[%c0_117, %c0_118], %300 {strides = array<i32>} : memref<16x32xf32, #tpu.memory_space<vmem>>, vector<16x32xf32>,
    %c0_119 = arith.constant 0 : index
    %c0_120 = arith.constant 0 : index
    %302 = vector.load %arg5[%c0_119, %c0_120] : memref<16x16xf32, #tpu.memory_space<vmem>>, vector<16x16xf32>
    %303 = arith.truncf %302 : vector<16x16xf32> to vector<16x16xbf16>
    %c0_121 = arith.constant 0 : index
    %c0_122 = arith.constant 0 : index
    %304 = vector.load %arg6[%c0_121, %c0_122] : memref<16x1xf32, #tpu.memory_space<vmem>>, vector<16x1xf32>
    %c3_123 = arith.constant 3 : index
    %305 = memref.load %arg0[%c3_123] : memref<23xf32, #tpu.memory_space<smem>>
    %c0_124 = arith.constant 0 : index
    %c0_125 = arith.constant 0 : index
    %306 = vector.load %arg11[%c0_124, %c0_125] : memref<16x32xf32, #tpu.memory_space<vmem>>, vector<16x32xf32>
    %307 = vector.broadcast %305 : f32 to vector<16x32xf32>
    %308 = arith.mulf %307, %306 : vector<16x32xf32>
    %c7_126 = arith.constant 7 : index
    %309 = memref.load %arg0[%c7_126] : memref<23xf32, #tpu.memory_space<smem>>
    %310 = vector.broadcast %309 : f32 to vector<16x32xf32>
    %311 = arith.addf %308, %310 : vector<16x32xf32>
    %cst_127 = arith.constant 0.000000e+00 : f32
    %312 = vector.broadcast %cst_127 : f32 to vector<16x32xf32>
    %313 = arith.cmpf oge, %311, %312 : vector<16x32xf32>
    %314 = vector.broadcast %0 : f32 to vector<16x32xf32>
    %315 = arith.mulf %314, %311 : vector<16x32xf32>
    %316 = arith.select %313, %311, %315 : vector<16x32xi1>, vector<16x32xf32>
    %317 = vector.shape_cast %316 : vector<16x32xf32> to vector<1x16x32xf32>
    %cst_128 = arith.constant dense<0.000000e+00> : vector<1xf32>
    %318 = vector.multi_reduction <add>, %317, %cst_128 [1, 2] : vector<1x16x32xf32> to vector<1xf32>
    %319 = vector.shape_cast %318 : vector<1xf32> to vector<1x1x1xf32>
    %320 = vector.extract %319[0, 0, 0] : f32 from vector<1x1x1xf32>
    %cst_129 = arith.constant 0.001953125 : f32
    %321 = arith.mulf %320, %cst_129 : f32
    %322 = vector.broadcast %321 : f32 to vector<16x32xf32>
    %323 = arith.subf %316, %322 : vector<16x32xf32>
    %324 = arith.mulf %323, %323 : vector<16x32xf32>
    %325 = vector.shape_cast %324 : vector<16x32xf32> to vector<1x16x32xf32>
    %cst_130 = arith.constant dense<0.000000e+00> : vector<1xf32>
    %326 = vector.multi_reduction <add>, %325, %cst_130 [1, 2] : vector<1x16x32xf32> to vector<1xf32>
    %327 = vector.shape_cast %326 : vector<1xf32> to vector<1x1x1xf32>
    %328 = vector.extract %327[0, 0, 0] : f32 from vector<1x1x1xf32>
    %cst_131 = arith.constant 0.001953125 : f32
    %329 = arith.mulf %328, %cst_131 : f32
    %cst_132 = arith.constant 9.99999993E-9 : f32
    %330 = arith.addf %329, %cst_132 : f32
    %331 = math.rsqrt %330 : f32
    %332 = vector.broadcast %331 : f32 to vector<16x1xf32>
    %333 = arith.mulf %332, %4 : vector<16x1xf32>
    %334 = vector.broadcast %333 : vector<16x1xf32> to vector<16x32xf32>
    %335 = arith.mulf %323, %334 : vector<16x32xf32>
    %336 = vector.broadcast %5 : vector<16x1xf32> to vector<16x32xf32>
    %337 = arith.addf %335, %336 : vector<16x32xf32>
    %338 = arith.truncf %337 : vector<16x32xf32> to vector<16x32xbf16>
    %cst_133 = arith.constant dense<0.000000e+00> : vector<16x32xf32>
    %339 = tpu.matmul %303, %338, %cst_133 {dimension_numbers = #tpu.dot_dimension_numbers<[1], [0], [0], [1], [0, 0, 1, 1], [], []>} : vector<16x16xbf16>, vector<16x32xbf16>, vector<16x32xf32> -> vector<16x32xf32>
    %340 = vector.broadcast %304 : vector<16x1xf32> to vector<16x32xf32>
    %341 = arith.addf %339, %340 : vector<16x32xf32>
    %342 = vector.extract_strided_slice %341 {offsets = [0, 0], sizes = [8, 32], strides = [1, 1]} : vector<16x32xf32> to vector<8x32xf32>
    %c0_134 = arith.constant 0 : index
    %c0_135 = arith.constant 0 : index
    %c0_136 = arith.constant 0 : index
    %343 = vector.load %arg7[%c0_134, %c0_135, %c0_136] : memref<4x8x32xf32, #tpu.memory_space<vmem>>, vector<1x8x32xf32>
    %344 = vector.shape_cast %343 : vector<1x8x32xf32> to vector<8x32xf32>
    %345 = vector.shape_cast %342 : vector<8x32xf32> to vector<1x8x32xf32>
    tpu.vector_store %arg7[%c0_134, %c0_135, %c0_136], %345 {strides = array<i32>} : memref<4x8x32xf32, #tpu.memory_space<vmem>>, vector<1x8x32xf32>,
    %346 = vector.extract_strided_slice %341 {offsets = [8, 0], sizes = [8, 32], strides = [1, 1]} : vector<16x32xf32> to vector<8x32xf32>
    %c0_137 = arith.constant 0 : index
    %c0_138 = arith.constant 0 : index
    %c0_139 = arith.constant 0 : index
    %347 = vector.load %arg8[%c0_137, %c0_138, %c0_139] : memref<4x8x32xf32, #tpu.memory_space<vmem>>, vector<1x8x32xf32>
    %348 = vector.shape_cast %347 : vector<1x8x32xf32> to vector<8x32xf32>
    %349 = vector.shape_cast %346 : vector<8x32xf32> to vector<1x8x32xf32>
    tpu.vector_store %arg8[%c0_137, %c0_138, %c0_139], %349 {strides = array<i32>} : memref<4x8x32xf32, #tpu.memory_space<vmem>>, vector<1x8x32xf32>,
    %c4_140 = arith.constant 4 : index
    %350 = memref.load %arg0[%c4_140] : memref<23xf32, #tpu.memory_space<smem>>
    %c0_141 = arith.constant 0 : index
    %c0_142 = arith.constant 0 : index
    %351 = vector.load %arg11[%c0_141, %c0_142] : memref<16x32xf32, #tpu.memory_space<vmem>>, vector<16x32xf32>
    %352 = vector.broadcast %350 : f32 to vector<16x32xf32>
    %353 = arith.mulf %352, %351 : vector<16x32xf32>
    %c8 = arith.constant 8 : index
    %354 = memref.load %arg0[%c8] : memref<23xf32, #tpu.memory_space<smem>>
    %355 = vector.broadcast %354 : f32 to vector<16x32xf32>
    %356 = arith.addf %353, %355 : vector<16x32xf32>
    %cst_143 = arith.constant 0.000000e+00 : f32
    %357 = vector.broadcast %cst_143 : f32 to vector<16x32xf32>
    %358 = arith.cmpf oge, %356, %357 : vector<16x32xf32>
    %359 = vector.broadcast %0 : f32 to vector<16x32xf32>
    %360 = arith.mulf %359, %356 : vector<16x32xf32>
    %361 = arith.select %358, %356, %360 : vector<16x32xi1>, vector<16x32xf32>
    %362 = vector.shape_cast %361 : vector<16x32xf32> to vector<1x16x32xf32>
    %cst_144 = arith.constant dense<0.000000e+00> : vector<1xf32>
    %363 = vector.multi_reduction <add>, %362, %cst_144 [1, 2] : vector<1x16x32xf32> to vector<1xf32>
    %364 = vector.shape_cast %363 : vector<1xf32> to vector<1x1x1xf32>
    %365 = vector.extract %364[0, 0, 0] : f32 from vector<1x1x1xf32>
    %cst_145 = arith.constant 0.001953125 : f32
    %366 = arith.mulf %365, %cst_145 : f32
    %367 = vector.broadcast %366 : f32 to vector<16x32xf32>
    %368 = arith.subf %361, %367 : vector<16x32xf32>
    %369 = arith.mulf %368, %368 : vector<16x32xf32>
    %370 = vector.shape_cast %369 : vector<16x32xf32> to vector<1x16x32xf32>
    %cst_146 = arith.constant dense<0.000000e+00> : vector<1xf32>
    %371 = vector.multi_reduction <add>, %370, %cst_146 [1, 2] : vector<1x16x32xf32> to vector<1xf32>
    %372 = vector.shape_cast %371 : vector<1xf32> to vector<1x1x1xf32>
    %373 = vector.extract %372[0, 0, 0] : f32 from vector<1x1x1xf32>
    %cst_147 = arith.constant 0.001953125 : f32
    %374 = arith.mulf %373, %cst_147 : f32
    %cst_148 = arith.constant 9.99999993E-9 : f32
    %375 = arith.addf %374, %cst_148 : f32
    %376 = math.rsqrt %375 : f32
    %377 = vector.broadcast %376 : f32 to vector<16x1xf32>
    %378 = arith.mulf %377, %4 : vector<16x1xf32>
    %379 = vector.broadcast %378 : vector<16x1xf32> to vector<16x32xf32>
    %380 = arith.mulf %368, %379 : vector<16x32xf32>
    %381 = vector.broadcast %5 : vector<16x1xf32> to vector<16x32xf32>
    %382 = arith.addf %380, %381 : vector<16x32xf32>
    %383 = arith.truncf %382 : vector<16x32xf32> to vector<16x32xbf16>
    %cst_149 = arith.constant dense<0.000000e+00> : vector<16x32xf32>
    %384 = tpu.matmul %303, %383, %cst_149 {dimension_numbers = #tpu.dot_dimension_numbers<[1], [0], [0], [1], [0, 0, 1, 1], [], []>} : vector<16x16xbf16>, vector<16x32xbf16>, vector<16x32xf32> -> vector<16x32xf32>
    %385 = vector.broadcast %304 : vector<16x1xf32> to vector<16x32xf32>
    %386 = arith.addf %384, %385 : vector<16x32xf32>
    %387 = vector.extract_strided_slice %386 {offsets = [0, 0], sizes = [8, 32], strides = [1, 1]} : vector<16x32xf32> to vector<8x32xf32>
    %c1_150 = arith.constant 1 : index
    %c0_151 = arith.constant 0 : index
    %c0_152 = arith.constant 0 : index
    %388 = vector.load %arg7[%c1_150, %c0_151, %c0_152] : memref<4x8x32xf32, #tpu.memory_space<vmem>>, vector<1x8x32xf32>
    %389 = vector.shape_cast %388 : vector<1x8x32xf32> to vector<8x32xf32>
    %390 = vector.shape_cast %387 : vector<8x32xf32> to vector<1x8x32xf32>
    tpu.vector_store %arg7[%c1_150, %c0_151, %c0_152], %390 {strides = array<i32>} : memref<4x8x32xf32, #tpu.memory_space<vmem>>, vector<1x8x32xf32>,
    %391 = vector.extract_strided_slice %386 {offsets = [8, 0], sizes = [8, 32], strides = [1, 1]} : vector<16x32xf32> to vector<8x32xf32>
    %c1_153 = arith.constant 1 : index
    %c0_154 = arith.constant 0 : index
    %c0_155 = arith.constant 0 : index
    %392 = vector.load %arg8[%c1_153, %c0_154, %c0_155] : memref<4x8x32xf32, #tpu.memory_space<vmem>>, vector<1x8x32xf32>
    %393 = vector.shape_cast %392 : vector<1x8x32xf32> to vector<8x32xf32>
    %394 = vector.shape_cast %391 : vector<8x32xf32> to vector<1x8x32xf32>
    tpu.vector_store %arg8[%c1_153, %c0_154, %c0_155], %394 {strides = array<i32>} : memref<4x8x32xf32, #tpu.memory_space<vmem>>, vector<1x8x32xf32>,
    %c5_156 = arith.constant 5 : index
    %395 = memref.load %arg0[%c5_156] : memref<23xf32, #tpu.memory_space<smem>>
    %c0_157 = arith.constant 0 : index
    %c0_158 = arith.constant 0 : index
    %396 = vector.load %arg11[%c0_157, %c0_158] : memref<16x32xf32, #tpu.memory_space<vmem>>, vector<16x32xf32>
    %397 = vector.broadcast %395 : f32 to vector<16x32xf32>
    %398 = arith.mulf %397, %396 : vector<16x32xf32>
    %c9 = arith.constant 9 : index
    %399 = memref.load %arg0[%c9] : memref<23xf32, #tpu.memory_space<smem>>
    %400 = vector.broadcast %399 : f32 to vector<16x32xf32>
    %401 = arith.addf %398, %400 : vector<16x32xf32>
    %cst_159 = arith.constant 0.000000e+00 : f32
    %402 = vector.broadcast %cst_159 : f32 to vector<16x32xf32>
    %403 = arith.cmpf oge, %401, %402 : vector<16x32xf32>
    %404 = vector.broadcast %0 : f32 to vector<16x32xf32>
    %405 = arith.mulf %404, %401 : vector<16x32xf32>
    %406 = arith.select %403, %401, %405 : vector<16x32xi1>, vector<16x32xf32>
    %407 = vector.shape_cast %406 : vector<16x32xf32> to vector<1x16x32xf32>
    %cst_160 = arith.constant dense<0.000000e+00> : vector<1xf32>
    %408 = vector.multi_reduction <add>, %407, %cst_160 [1, 2] : vector<1x16x32xf32> to vector<1xf32>
    %409 = vector.shape_cast %408 : vector<1xf32> to vector<1x1x1xf32>
    %410 = vector.extract %409[0, 0, 0] : f32 from vector<1x1x1xf32>
    %cst_161 = arith.constant 0.001953125 : f32
    %411 = arith.mulf %410, %cst_161 : f32
    %412 = vector.broadcast %411 : f32 to vector<16x32xf32>
    %413 = arith.subf %406, %412 : vector<16x32xf32>
    %414 = arith.mulf %413, %413 : vector<16x32xf32>
    %415 = vector.shape_cast %414 : vector<16x32xf32> to vector<1x16x32xf32>
    %cst_162 = arith.constant dense<0.000000e+00> : vector<1xf32>
    %416 = vector.multi_reduction <add>, %415, %cst_162 [1, 2] : vector<1x16x32xf32> to vector<1xf32>
    %417 = vector.shape_cast %416 : vector<1xf32> to vector<1x1x1xf32>
    %418 = vector.extract %417[0, 0, 0] : f32 from vector<1x1x1xf32>
    %cst_163 = arith.constant 0.001953125 : f32
    %419 = arith.mulf %418, %cst_163 : f32
    %cst_164 = arith.constant 9.99999993E-9 : f32
    %420 = arith.addf %419, %cst_164 : f32
    %421 = math.rsqrt %420 : f32
    %422 = vector.broadcast %421 : f32 to vector<16x1xf32>
    %423 = arith.mulf %422, %4 : vector<16x1xf32>
    %424 = vector.broadcast %423 : vector<16x1xf32> to vector<16x32xf32>
    %425 = arith.mulf %413, %424 : vector<16x32xf32>
    %426 = vector.broadcast %5 : vector<16x1xf32> to vector<16x32xf32>
    %427 = arith.addf %425, %426 : vector<16x32xf32>
    %428 = arith.truncf %427 : vector<16x32xf32> to vector<16x32xbf16>
    %cst_165 = arith.constant dense<0.000000e+00> : vector<16x32xf32>
    %429 = tpu.matmul %303, %428, %cst_165 {dimension_numbers = #tpu.dot_dimension_numbers<[1], [0], [0], [1], [0, 0, 1, 1], [], []>} : vector<16x16xbf16>, vector<16x32xbf16>, vector<16x32xf32> -> vector<16x32xf32>
    %430 = vector.broadcast %304 : vector<16x1xf32> to vector<16x32xf32>
    %431 = arith.addf %429, %430 : vector<16x32xf32>
    %432 = vector.extract_strided_slice %431 {offsets = [0, 0], sizes = [8, 32], strides = [1, 1]} : vector<16x32xf32> to vector<8x32xf32>
    %c2_166 = arith.constant 2 : index
    %c0_167 = arith.constant 0 : index
    %c0_168 = arith.constant 0 : index
    %433 = vector.load %arg7[%c2_166, %c0_167, %c0_168] : memref<4x8x32xf32, #tpu.memory_space<vmem>>, vector<1x8x32xf32>
    %434 = vector.shape_cast %433 : vector<1x8x32xf32> to vector<8x32xf32>
    %435 = vector.shape_cast %432 : vector<8x32xf32> to vector<1x8x32xf32>
    tpu.vector_store %arg7[%c2_166, %c0_167, %c0_168], %435 {strides = array<i32>} : memref<4x8x32xf32, #tpu.memory_space<vmem>>, vector<1x8x32xf32>,
    %436 = vector.extract_strided_slice %431 {offsets = [8, 0], sizes = [8, 32], strides = [1, 1]} : vector<16x32xf32> to vector<8x32xf32>
    %c2_169 = arith.constant 2 : index
    %c0_170 = arith.constant 0 : index
    %c0_171 = arith.constant 0 : index
    %437 = vector.load %arg8[%c2_169, %c0_170, %c0_171] : memref<4x8x32xf32, #tpu.memory_space<vmem>>, vector<1x8x32xf32>
    %438 = vector.shape_cast %437 : vector<1x8x32xf32> to vector<8x32xf32>
    %439 = vector.shape_cast %436 : vector<8x32xf32> to vector<1x8x32xf32>
    tpu.vector_store %arg8[%c2_169, %c0_170, %c0_171], %439 {strides = array<i32>} : memref<4x8x32xf32, #tpu.memory_space<vmem>>, vector<1x8x32xf32>,
    %c6_172 = arith.constant 6 : index
    %440 = memref.load %arg0[%c6_172] : memref<23xf32, #tpu.memory_space<smem>>
    %c0_173 = arith.constant 0 : index
    %c0_174 = arith.constant 0 : index
    %441 = vector.load %arg11[%c0_173, %c0_174] : memref<16x32xf32, #tpu.memory_space<vmem>>, vector<16x32xf32>
    %442 = vector.broadcast %440 : f32 to vector<16x32xf32>
    %443 = arith.mulf %442, %441 : vector<16x32xf32>
    %c10 = arith.constant 10 : index
    %444 = memref.load %arg0[%c10] : memref<23xf32, #tpu.memory_space<smem>>
    %445 = vector.broadcast %444 : f32 to vector<16x32xf32>
    %446 = arith.addf %443, %445 : vector<16x32xf32>
    %cst_175 = arith.constant 0.000000e+00 : f32
    %447 = vector.broadcast %cst_175 : f32 to vector<16x32xf32>
    %448 = arith.cmpf oge, %446, %447 : vector<16x32xf32>
    %449 = vector.broadcast %0 : f32 to vector<16x32xf32>
    %450 = arith.mulf %449, %446 : vector<16x32xf32>
    %451 = arith.select %448, %446, %450 : vector<16x32xi1>, vector<16x32xf32>
    %452 = vector.shape_cast %451 : vector<16x32xf32> to vector<1x16x32xf32>
    %cst_176 = arith.constant dense<0.000000e+00> : vector<1xf32>
    %453 = vector.multi_reduction <add>, %452, %cst_176 [1, 2] : vector<1x16x32xf32> to vector<1xf32>
    %454 = vector.shape_cast %453 : vector<1xf32> to vector<1x1x1xf32>
    %455 = vector.extract %454[0, 0, 0] : f32 from vector<1x1x1xf32>
    %cst_177 = arith.constant 0.001953125 : f32
    %456 = arith.mulf %455, %cst_177 : f32
    %457 = vector.broadcast %456 : f32 to vector<16x32xf32>
    %458 = arith.subf %451, %457 : vector<16x32xf32>
    %459 = arith.mulf %458, %458 : vector<16x32xf32>
    %460 = vector.shape_cast %459 : vector<16x32xf32> to vector<1x16x32xf32>
    %cst_178 = arith.constant dense<0.000000e+00> : vector<1xf32>
    %461 = vector.multi_reduction <add>, %460, %cst_178 [1, 2] : vector<1x16x32xf32> to vector<1xf32>
    %462 = vector.shape_cast %461 : vector<1xf32> to vector<1x1x1xf32>
    %463 = vector.extract %462[0, 0, 0] : f32 from vector<1x1x1xf32>
    %cst_179 = arith.constant 0.001953125 : f32
    %464 = arith.mulf %463, %cst_179 : f32
    %cst_180 = arith.constant 9.99999993E-9 : f32
    %465 = arith.addf %464, %cst_180 : f32
    %466 = math.rsqrt %465 : f32
    %467 = vector.broadcast %466 : f32 to vector<16x1xf32>
    %468 = arith.mulf %467, %4 : vector<16x1xf32>
    %469 = vector.broadcast %468 : vector<16x1xf32> to vector<16x32xf32>
    %470 = arith.mulf %458, %469 : vector<16x32xf32>
    %471 = vector.broadcast %5 : vector<16x1xf32> to vector<16x32xf32>
    %472 = arith.addf %470, %471 : vector<16x32xf32>
    %473 = arith.truncf %472 : vector<16x32xf32> to vector<16x32xbf16>
    %cst_181 = arith.constant dense<0.000000e+00> : vector<16x32xf32>
    %474 = tpu.matmul %303, %473, %cst_181 {dimension_numbers = #tpu.dot_dimension_numbers<[1], [0], [0], [1], [0, 0, 1, 1], [], []>} : vector<16x16xbf16>, vector<16x32xbf16>, vector<16x32xf32> -> vector<16x32xf32>
    %475 = vector.broadcast %304 : vector<16x1xf32> to vector<16x32xf32>
    %476 = arith.addf %474, %475 : vector<16x32xf32>
    %477 = vector.extract_strided_slice %476 {offsets = [0, 0], sizes = [8, 32], strides = [1, 1]} : vector<16x32xf32> to vector<8x32xf32>
    %c3_182 = arith.constant 3 : index
    %c0_183 = arith.constant 0 : index
    %c0_184 = arith.constant 0 : index
    %478 = vector.load %arg7[%c3_182, %c0_183, %c0_184] : memref<4x8x32xf32, #tpu.memory_space<vmem>>, vector<1x8x32xf32>
    %479 = vector.shape_cast %478 : vector<1x8x32xf32> to vector<8x32xf32>
    %480 = vector.shape_cast %477 : vector<8x32xf32> to vector<1x8x32xf32>
    tpu.vector_store %arg7[%c3_182, %c0_183, %c0_184], %480 {strides = array<i32>} : memref<4x8x32xf32, #tpu.memory_space<vmem>>, vector<1x8x32xf32>,
    %481 = vector.extract_strided_slice %476 {offsets = [8, 0], sizes = [8, 32], strides = [1, 1]} : vector<16x32xf32> to vector<8x32xf32>
    %c3_185 = arith.constant 3 : index
    %c0_186 = arith.constant 0 : index
    %c0_187 = arith.constant 0 : index
    %482 = vector.load %arg8[%c3_185, %c0_186, %c0_187] : memref<4x8x32xf32, #tpu.memory_space<vmem>>, vector<1x8x32xf32>
    %483 = vector.shape_cast %482 : vector<1x8x32xf32> to vector<8x32xf32>
    %484 = vector.shape_cast %481 : vector<8x32xf32> to vector<1x8x32xf32>
    tpu.vector_store %arg8[%c3_185, %c0_186, %c0_187], %484 {strides = array<i32>} : memref<4x8x32xf32, #tpu.memory_space<vmem>>, vector<1x8x32xf32>,
    return
  }
}

</mosaic_0001>

<llo_original>
// kernel: tpu_custom_call.1
$region0: #{tpu_custom_call.1}
  #allocation0 [shape = 'u32[]', space=smem, size = 0x4, offset = 0x4, fixed_abs, tag = 'smem constant byte address 0x4 - core index']
  #allocation1 [shape = 'u32[144,128]{1,0:T(1,128)}', space=vmem, size = 0x12000, scoped, tag = 'internal scratch']
  #allocation2 [shape = 'f32[16,32]{1,0:T(8,128)}', space=vmem, size = 0x2000, scoped, tag = 'scratch operand']
  #allocation3 [shape = 'f32[16,34]{1,0:T(8,128)}', space=vmem, size = 0x2000, scoped, tag = 'scratch operand']
  #allocation4 [shape = 'f32[16,32]{1,0:T(8,128)}', space=vmem, size = 0x2000, scoped, tag = 'scratch operand']
  %s0 = inlined_call_operand.vmem [shape: f32[23], index: 0, kind: input, shape index: {}]
  %s1 = inlined_call_operand.vmem [shape: f32[4,8,32], index: 1, kind: input, shape index: {}]
  %s2 = inlined_call_operand.vmem [shape: f32[16,8], index: 2, kind: input, shape index: {}]
  %s3 = inlined_call_operand.vmem [shape: f32[16,8], index: 3, kind: input, shape index: {}]
  %s4 = inlined_call_operand.vmem [shape: f32[16,3], index: 4, kind: input, shape index: {}]
  %s5 = inlined_call_operand.vmem [shape: f32[16,16], index: 5, kind: input, shape index: {}]
  %s6 = inlined_call_operand.vmem [shape: f32[16,1], index: 6, kind: input, shape index: {}]
  %s7 = inlined_call_operand.hbm [shape: f32[4,8,32], index: 7, kind: output, shape index: {0}]
  %s8 = inlined_call_operand.hbm [shape: f32[4,8,32], index: 8, kind: output, shape index: {1}]
  %9 = xla_tuple %s7, %s8
  %s10 = sld [smem:[#allocation0]]
  $region50: #{tpu_custom_call.1} parent=0
    _
  %s12 = ssub.s32 1, %s10
  %s13 = scalar_select 0, %s12, %s10
  $region1: #{tpu_custom_call.1} parent=0
    #allocation5 [shape = 'u8[512]{0}', space=smem, size = 0x200, scoped, tag = 'input window, operand 0, single buffered']
    #allocation6 [shape = 's32[1]{0}', space=sflag, size = 0x4, scoped, tag = 'scoped memory for tpu_custom_call.1']
    #allocation7 [shape = 's32[1]{0}', space=sflag, size = 0x4, scoped, tag = 'scoped memory for tpu_custom_call.1']
    #allocation8 [shape = 'u8[16384]{0}', space=vmem, size = 0x4000, scoped, tag = 'output window, operand 0, single buffered']
    #allocation9 [shape = 'u8[16384]{0}', space=vmem, size = 0x4000, scoped, tag = 'output window, operand 1, single buffered']
    #allocation10 [shape = 's32[1]{0}', space=sflag, size = 0x4, scoped, tag = 'scoped memory for tpu_custom_call.1']
    %14 = vsyncpa [#allocation7], 0
    %15 = vsyncpa [#allocation6], 0
    %16 = vsyncpa [#allocation10], 0
    // Predicated region
    $region2: #{tpu_custom_call.1} parent=1 // pred_check
      _
    $region3: #{tpu_custom_call.1} parent=1 // pred_check_branch
      %18 = sbr.rel (0) target = $region5
    $region4: #{tpu_custom_call.1} parent=1 // pred_region
      %s20 = ssub.s32 16, 16
      %21 = vsyncadd [#allocation7], %s20
      %s23 = sshll.u32 %s0, 4
      %s24 = int_to_ptr.vmem [resolvable:$true] %s23
      %26 = dma.vmem_to_smem %s24, 16, [#allocation5], [#allocation7]
    $region5: #{tpu_custom_call.1} parent=1 // pred_fallthru
      _
    // Predicated region
    $region6: #{tpu_custom_call.1} parent=1 // pred_check
      _
    $region7: #{tpu_custom_call.1} parent=1 // pred_check_branch
      %28 = sbr.rel (0) target = $region9
    $region8: #{tpu_custom_call.1} parent=1 // pred_region
      _
    $region9: #{tpu_custom_call.1} parent=1 // pred_fallthru
      _
    // Predicated region
    $region10: #{tpu_custom_call.1} parent=1 // pred_check
      _
    $region11: #{tpu_custom_call.1} parent=1 // pred_check_branch
      %30 = sbr.rel (0) target = $region13
    $region12: #{tpu_custom_call.1} parent=1 // pred_region
      _
    $region13: #{tpu_custom_call.1} parent=1 // pred_fallthru
      _
    // Predicated region
    $region14: #{tpu_custom_call.1} parent=1 // pred_check
      _
    $region15: #{tpu_custom_call.1} parent=1 // pred_check_branch
      %32 = sbr.rel (0) target = $region17
    $region16: #{tpu_custom_call.1} parent=1 // pred_region
      _
    $region17: #{tpu_custom_call.1} parent=1 // pred_fallthru
      _
    // Predicated region
    $region18: #{tpu_custom_call.1} parent=1 // pred_check
      _
    $region19: #{tpu_custom_call.1} parent=1 // pred_check_branch
      %34 = sbr.rel (0) target = $region21
    $region20: #{tpu_custom_call.1} parent=1 // pred_region
      _
    $region21: #{tpu_custom_call.1} parent=1 // pred_fallthru
      _
    // Predicated region
    $region22: #{tpu_custom_call.1} parent=1 // pred_check
      _
    $region23: #{tpu_custom_call.1} parent=1 // pred_check_branch
      %36 = sbr.rel (0) target = $region25
    $region24: #{tpu_custom_call.1} parent=1 // pred_region
      _
    $region25: #{tpu_custom_call.1} parent=1 // pred_fallthru
      _
    // Predicated region
    $region26: #{tpu_custom_call.1} parent=1 // pred_check
      _
    $region27: #{tpu_custom_call.1} parent=1 // pred_check_branch
      %38 = sbr.rel (0) target = $region29
    $region28: #{tpu_custom_call.1} parent=1 // pred_region
      _
    $region29: #{tpu_custom_call.1} parent=1 // pred_fallthru
      _
    // Predicated region
    $region30: #{tpu_custom_call.1} parent=1 // pred_check
      _
    $region31: #{tpu_custom_call.1} parent=1 // pred_check_branch
      %40 = sbr.rel (0) target = $region33
    $region32: #{tpu_custom_call.1} parent=1 // pred_region
      %41 = dma.done [#allocation7], 16
    $region33: #{tpu_custom_call.1} parent=1 // pred_fallthru
      _
    %42 = sfence
    %s44 = sld [smem:[#allocation5]]
    %s45 = sld [smem:[#allocation5 + $0x1]]
    %s46 = sld [smem:[#allocation5 + $0x2]]
    %v47 = vld [vmem:[%s3] sm:$0xff]
    %v48 = vld [vmem:[%s3 + $0x8] sm:$0xff]
    %v49 = vld [vmem:[%s2] sm:$0xff]
    %v50 = vld [vmem:[%s2 + $0x8] sm:$0xff]
    %v51 = vpack.c.bf16 %v50, %v49
    %v52 = vld [vmem:[%s1] sm:$0xff]
    %v53 = vpack.c.bf16 %v52, %v52
    %55 = vset.pattern.permute.xlu0 0
    %56 = vperm.xlu0 %55, %v47
    %v57 = vpop.permute.xlu0 %56
    %60 = vset.pattern.permute.xlu0 0
    %61 = vperm.xlu0 %60, %v48
    %v62 = vpop.permute.xlu0 %61
    %vm64 = vcmask 64512
    %v66 = vsel %vm64, %v51, 0
    %vm68 = vcmask 1043456
    %v70 = vsel %vm68, %v53, 0
    %72 = vmatprep.subr.bf16.mxu0 0
    %73 = vmatpush1.bf16.msra.mxu0 %v70
    %74 = vmatprep.subr.bf16.mxu0 0
    %75 = vmatpush1.bf16.msra.mxu0 0
    %76 = vmatprep.subr.bf16.mxu0 0
    %77 = vmatpush1.bf16.msra.mxu0 0
    %78 = vmatprep.subr.bf16.mxu0 0
    %79 = vmatpush1.bf16.msra.mxu0 0
    %80 = vmatprep.subr.bf16.mxu0 0
    %81 = vmatpush1.bf16.msra.mxu0 0
    %82 = vmatprep.subr.bf16.mxu0 0
    %83 = vmatpush1.bf16.msra.mxu0 0
    %84 = vmatprep.subr.bf16.mxu0 0
    %85 = vmatpush1.bf16.msra.mxu0 0
    %86 = vmatprep.subr.bf16.mxu0 0
    %87 = vmatpush1.bf16.msra.mxu0 0
    %88 = vmatprep.subr.bf16.mxu0 0
    %89 = vmatpush1.bf16.msra.mxu0 0
    %90 = vmatprep.subr.bf16.mxu0 0
    %91 = vmatpush1.bf16.msra.mxu0 0
    %92 = vmatprep.subr.bf16.mxu0 0
    %93 = vmatpush1.bf16.msra.mxu0 0
    %94 = vmatprep.subr.bf16.mxu0 0
    %95 = vmatpush1.bf16.msra.mxu0 0
    %96 = vmatprep.subr.bf16.mxu0 0
    %97 = vmatpush1.bf16.msra.mxu0 0
    %98 = vmatprep.subr.bf16.mxu0 0
    %99 = vmatpush1.bf16.msra.mxu0 0
    %100 = vmatprep.subr.bf16.mxu0 0
    %101 = vmatpush1.bf16.msra.mxu0 0
    %102 = vmatprep.subr.bf16.mxu0 0
    %103 = vmatpush1.bf16.msra.mxu0 0
    %104 = vmatprep.mubr.bf16.mxu0 0
    %105 = vmatmul.mubr.bf16.gmra.mrb[0].mxu0 %v66
    %v106 = vpop.f32.mrb[0].mxu0
    %v107 = vadd.f32 %v57, %v106
    %v108 = vpop.f32.mrb[0].mxu0
    %v109 = vpop.f32.mrb[0].mxu0
    %v110 = vadd.f32 %v62, %v109
    %v111 = vpop.f32.mrb[0].mxu0
    %112 = vdwg.mxu0
    %vm113 = vcmp.ge.f32.partialorder %v107, 0.0
    %vm114 = vcmp.ge.f32.partialorder %v110, 0.0
    %v115 = vstv %s44
    %v116 = vmul.f32 %v115, %v107
    %v117 = vmul.f32 %v115, %v110
    %v118 = vsel %vm113, %v107, %v116
    %v119 = vsel %vm114, %v110, %v117
    %vm120 = vcmask 261120
    %v121 = vsel %vm120, %v118, 0.0
    %v122 = vsel %vm120, %v119, 0.0
    %v123 = vadd.f32 %v121, %v122
    %124 = vadd.xlane.f32.xlu0 %v123
    %v125 = vpop.xlane.xlu0 %124
    %v126 = vrot.slane %v125, 4
    %v127 = vadd.f32 %v125, %v126
    %v128 = vrot.slane %v127, 2
    %v129 = vadd.f32 %v127, %v128
    %v130 = vrot.slane %v129, 1
    %v131 = vadd.f32 %v129, %v130
    %s132 = vtos %v131
    %s133 = smul.f32 %s132, 0.001953125
    %v134 = vstv %s133
    %v135 = vsub.f32 %v118, %v134
    %v136 = vsub.f32 %v119, %v134
    %v137 = vmul.f32 %v135, %v135
    %v138 = vmul.f32 %v136, %v136
    %v139 = vsel %vm120, %v137, 0.0
    %v140 = vsel %vm120, %v138, 0.0
    %v141 = vadd.f32 %v139, %v140
    %142 = vadd.xlane.f32.xlu0 %v141
    %v143 = vpop.xlane.xlu0 %142
    %v144 = vrot.slane %v143, 4
    %v145 = vadd.f32 %v143, %v144
    %v146 = vrot.slane %v145, 2
    %v147 = vadd.f32 %v145, %v146
    %v148 = vrot.slane %v147, 1
    %v149 = vadd.f32 %v147, %v148
    %s150 = vtos %v149
    %s151 = smul.f32 %s150, 0.001953125
    %s152 = sadd.f32 %s151, 1e-08
    %v153 = vstv %s152
    %v154 = vrsqrt.pop %v153
    %s155 = vtos %v154
    %v156 = vstv %s155
    %v157 = vmul.f32 %v156, %v47
    %v158 = vmul.f32 %v156, %v48
    %160 = vset.pattern.permute.xlu0 1
    %161 = vperm.xlu0 %160, %v157
    %v162 = vpop.permute.xlu0 %161
    %165 = vset.pattern.permute.xlu0 1
    %166 = vperm.xlu0 %165, %v158
    %v167 = vpop.permute.xlu0 %166
    %v169 = vmul.f32 %v135, %v162
    %v170 = vmul.f32 %v136, %v167
    %171 = vset.pattern.permute.xlu0 2
    %172 = vperm.xlu0 %171, %v47
    %v173 = vpop.permute.xlu0 %172
    %175 = vset.pattern.permute.xlu0 2
    %176 = vperm.xlu0 %175, %v48
    %v177 = vpop.permute.xlu0 %176
    %v179 = vadd.f32 %v169, %v173
    %v180 = vadd.f32 %v170, %v177
    %s181 = sld [smem:[#allocation5 + $0xc]]
    %s182 = sld [smem:[#allocation5 + $0xb]]
    %s183 = sld [smem:[#allocation5 + $0xd]]
    %v184 = vstv %s181
    %v185 = vmul.f32 %v184, %v179
    %v186 = vmul.f32 %v184, %v180
    %v187 = vstv %s182
    %v188 = vmul.f32 %v187, %v47
    %v189 = vmul.f32 %v187, %v48
    %v190 = vrot.slane %v179, 7
    %v191 = vrot.slane %v180, 7
    %v192 = vlaneseq
    %v193 = vshrl.u32 %v192, 7
    %vm194 = vcmp.lt.s32.totalorder %v193, 1
    %v195 = vsel %vm194, %v190, %v191
    %v196 = vsel %vm194, %v191, %v190
    %198 = vset.pattern.permute.xlu0 6
    %199 = vperm.xlu0 %198, %v188
    %v200 = vpop.permute.xlu0 %199
    %203 = vset.pattern.permute.xlu0 6
    %204 = vperm.xlu0 %203, %v189
    %v205 = vpop.permute.xlu0 %204
    %v207 = vmul.f32 %v200, %v196
    %v208 = vmul.f32 %v205, %v195
    %v209 = vadd.f32 %v185, %v207
    %v210 = vadd.f32 %v186, %v208
    %v211 = vstv %s183
    %v212 = vmul.f32 %v211, %v47
    %v213 = vmul.f32 %v211, %v48
    %v214 = vrot.slane %v179, 1
    %v215 = vrot.slane %v180, 1
    %vm216 = vcmp.lt.s32.totalorder %v193, 7
    %v217 = vsel %vm216, %v214, %v215
    %v218 = vsel %vm216, %v215, %v214
    %220 = vset.pattern.permute.xlu0 7
    %221 = vperm.xlu0 %220, %v212
    %v222 = vpop.permute.xlu0 %221
    %225 = vset.pattern.permute.xlu0 7
    %226 = vperm.xlu0 %225, %v213
    %v227 = vpop.permute.xlu0 %226
    %v229 = vmul.f32 %v222, %v217
    %v230 = vmul.f32 %v227, %v218
    %v231 = vadd.f32 %v209, %v229
    %v232 = vadd.f32 %v210, %v230
    %v233 = vstv %s46
    %v234 = vadd.f32 %v231, %v233
    %v235 = vadd.f32 %v232, %v233
    %236 = vst.msk [vmem:[#allocation2] sm:$0xff] %vm120, %v234
    %237 = vst.msk [vmem:[#allocation2 + $0x8] sm:$0xff] %vm120, %v235
    %s238 = scalar_lea.vmem %s1, 8
    %v239 = vld [vmem:[%s238] sm:$0xff]
    %v240 = vpack.c.bf16 %v239, %v239
    %v242 = vsel %vm68, %v240, 0
    %244 = vmatprep.subr.bf16.mxu0 0
    %245 = vmatpush1.bf16.msra.mxu0 %v242
    %246 = vmatprep.subr.bf16.mxu0 0
    %247 = vmatpush1.bf16.msra.mxu0 0
    %248 = vmatprep.subr.bf16.mxu0 0
    %249 = vmatpush1.bf16.msra.mxu0 0
    %250 = vmatprep.subr.bf16.mxu0 0
    %251 = vmatpush1.bf16.msra.mxu0 0
    %252 = vmatprep.subr.bf16.mxu0 0
    %253 = vmatpush1.bf16.msra.mxu0 0
    %254 = vmatprep.subr.bf16.mxu0 0
    %255 = vmatpush1.bf16.msra.mxu0 0
    %256 = vmatprep.subr.bf16.mxu0 0
    %257 = vmatpush1.bf16.msra.mxu0 0
    %258 = vmatprep.subr.bf16.mxu0 0
    %259 = vmatpush1.bf16.msra.mxu0 0
    %260 = vmatprep.subr.bf16.mxu0 0
    %261 = vmatpush1.bf16.msra.mxu0 0
    %262 = vmatprep.subr.bf16.mxu0 0
    %263 = vmatpush1.bf16.msra.mxu0 0
    %264 = vmatprep.subr.bf16.mxu0 0
    %265 = vmatpush1.bf16.msra.mxu0 0
    %266 = vmatprep.subr.bf16.mxu0 0
    %267 = vmatpush1.bf16.msra.mxu0 0
    %268 = vmatprep.subr.bf16.mxu0 0
    %269 = vmatpush1.bf16.msra.mxu0 0
    %270 = vmatprep.subr.bf16.mxu0 0
    %271 = vmatpush1.bf16.msra.mxu0 0
    %272 = vmatprep.subr.bf16.mxu0 0
    %273 = vmatpush1.bf16.msra.mxu0 0
    %274 = vmatprep.subr.bf16.mxu0 0
    %275 = vmatpush1.bf16.msra.mxu0 0
    %276 = vmatprep.mubr.bf16.mxu0 0
    %277 = vmatmul.mubr.bf16.gmra.mrb[0].mxu0 %v66
    %v278 = vpop.f32.mrb[0].mxu0
    %v279 = vadd.f32 %v57, %v278
    %v280 = vpop.f32.mrb[0].mxu0
    %v281 = vpop.f32.mrb[0].mxu0
    %v282 = vadd.f32 %v62, %v281
    %v283 = vpop.f32.mrb[0].mxu0
    %284 = vdwg.mxu0
    %vm285 = vcmp.ge.f32.partialorder %v279, 0.0
    %vm286 = vcmp.ge.f32.partialorder %v282, 0.0
    %v287 = vmul.f32 %v115, %v279
    %v288 = vmul.f32 %v115, %v282
    %v289 = vsel %vm285, %v279, %v287
    %v290 = vsel %vm286, %v282, %v288
    %v291 = vsel %vm120, %v289, 0.0
    %v292 = vsel %vm120, %v290, 0.0
    %v293 = vadd.f32 %v291, %v292
    %294 = vadd.xlane.f32.xlu0 %v293
    %v295 = vpop.xlane.xlu0 %294
    %v296 = vrot.slane %v295, 4
    %v297 = vadd.f32 %v295, %v296
    %v298 = vrot.slane %v297, 2
    %v299 = vadd.f32 %v297, %v298
    %v300 = vrot.slane %v299, 1
    %v301 = vadd.f32 %v299, %v300
    %s302 = vtos %v301
    %s303 = smul.f32 %s302, 0.001953125
    %v304 = vstv %s303
    %v305 = vsub.f32 %v289, %v304
    %v306 = vsub.f32 %v290, %v304
    %v307 = vmul.f32 %v305, %v305
    %v308 = vmul.f32 %v306, %v306
    %v309 = vsel %vm120, %v307, 0.0
    %v310 = vsel %vm120, %v308, 0.0
    %v311 = vadd.f32 %v309, %v310
    %312 = vadd.xlane.f32.xlu0 %v311
    %v313 = vpop.xlane.xlu0 %312
    %v314 = vrot.slane %v313, 4
    %v315 = vadd.f32 %v313, %v314
    %v316 = vrot.slane %v315, 2
    %v317 = vadd.f32 %v315, %v316
    %v318 = vrot.slane %v317, 1
    %v319 = vadd.f32 %v317, %v318
    %s320 = vtos %v319
    %s321 = smul.f32 %s320, 0.001953125
    %s322 = sadd.f32 %s321, 1e-08
    %v323 = vstv %s322
    %v324 = vrsqrt.pop %v323
    %s325 = vtos %v324
    %v326 = vstv %s325
    %v327 = vmul.f32 %v326, %v47
    %v328 = vmul.f32 %v326, %v48
    %330 = vset.pattern.permute.xlu0 1
    %331 = vperm.xlu0 %330, %v327
    %v332 = vpop.permute.xlu0 %331
    %335 = vset.pattern.permute.xlu0 1
    %336 = vperm.xlu0 %335, %v328
    %v337 = vpop.permute.xlu0 %336
    %v339 = vmul.f32 %v305, %v332
    %v340 = vmul.f32 %v306, %v337
    %v341 = vadd.f32 %v339, %v173
    %v342 = vadd.f32 %v340, %v177
    %s343 = sld [smem:[#allocation5 + $0xf]]
    %s344 = sld [smem:[#allocation5 + $0xe]]
    %s345 = sld [smem:[#allocation5 + $0x10]]
    %v346 = vstv %s343
    %v347 = vmul.f32 %v346, %v341
    %v348 = vmul.f32 %v346, %v342
    %v349 = vstv %s344
    %v350 = vmul.f32 %v349, %v47
    %v351 = vmul.f32 %v349, %v48
    %v352 = vrot.slane %v341, 7
    %v353 = vrot.slane %v342, 7
    %v354 = vsel %vm194, %v352, %v353
    %v355 = vsel %vm194, %v353, %v352
    %357 = vset.pattern.permute.xlu0 6
    %358 = vperm.xlu0 %357, %v350
    %v359 = vpop.permute.xlu0 %358
    %362 = vset.pattern.permute.xlu0 6
    %363 = vperm.xlu0 %362, %v351
    %v364 = vpop.permute.xlu0 %363
    %v366 = vmul.f32 %v359, %v355
    %v367 = vmul.f32 %v364, %v354
    %v368 = vadd.f32 %v347, %v366
    %v369 = vadd.f32 %v348, %v367
    %v370 = vstv %s345
    %v371 = vmul.f32 %v370, %v47
    %v372 = vmul.f32 %v370, %v48
    %v373 = vrot.slane %v341, 1
    %v374 = vrot.slane %v342, 1
    %v375 = vsel %vm216, %v373, %v374
    %v376 = vsel %vm216, %v374, %v373
    %378 = vset.pattern.permute.xlu0 7
    %379 = vperm.xlu0 %378, %v371
    %v380 = vpop.permute.xlu0 %379
    %383 = vset.pattern.permute.xlu0 7
    %384 = vperm.xlu0 %383, %v372
    %v385 = vpop.permute.xlu0 %384
    %v387 = vmul.f32 %v380, %v375
    %v388 = vmul.f32 %v385, %v376
    %v389 = vadd.f32 %v368, %v387
    %v390 = vadd.f32 %v369, %v388
    %v391 = vld [vmem:[#allocation2] sm:$0xff]
    %v392 = vld [vmem:[#allocation2 + $0x8] sm:$0xff]
    %v393 = vadd.f32 %v391, %v389
    %v394 = vadd.f32 %v392, %v390
    %395 = vst.msk [vmem:[#allocation2] sm:$0xff] %vm120, %v393
    %396 = vst.msk [vmem:[#allocation2 + $0x8] sm:$0xff] %vm120, %v394
    %s397 = scalar_lea.vmem %s1, 16
    %v398 = vld [vmem:[%s397] sm:$0xff]
    %v399 = vpack.c.bf16 %v398, %v398
    %v401 = vsel %vm68, %v399, 0
    %403 = vmatprep.subr.bf16.mxu0 0
    %404 = vmatpush1.bf16.msra.mxu0 %v401
    %405 = vmatprep.subr.bf16.mxu0 0
    %406 = vmatpush1.bf16.msra.mxu0 0
    %407 = vmatprep.subr.bf16.mxu0 0
    %408 = vmatpush1.bf16.msra.mxu0 0
    %409 = vmatprep.subr.bf16.mxu0 0
    %410 = vmatpush1.bf16.msra.mxu0 0
    %411 = vmatprep.subr.bf16.mxu0 0
    %412 = vmatpush1.bf16.msra.mxu0 0
    %413 = vmatprep.subr.bf16.mxu0 0
    %414 = vmatpush1.bf16.msra.mxu0 0
    %415 = vmatprep.subr.bf16.mxu0 0
    %416 = vmatpush1.bf16.msra.mxu0 0
    %417 = vmatprep.subr.bf16.mxu0 0
    %418 = vmatpush1.bf16.msra.mxu0 0
    %419 = vmatprep.subr.bf16.mxu0 0
    %420 = vmatpush1.bf16.msra.mxu0 0
    %421 = vmatprep.subr.bf16.mxu0 0
    %422 = vmatpush1.bf16.msra.mxu0 0
    %423 = vmatprep.subr.bf16.mxu0 0
    %424 = vmatpush1.bf16.msra.mxu0 0
    %425 = vmatprep.subr.bf16.mxu0 0
    %426 = vmatpush1.bf16.msra.mxu0 0
    %427 = vmatprep.subr.bf16.mxu0 0
    %428 = vmatpush1.bf16.msra.mxu0 0
    %429 = vmatprep.subr.bf16.mxu0 0
    %430 = vmatpush1.bf16.msra.mxu0 0
    %431 = vmatprep.subr.bf16.mxu0 0
    %432 = vmatpush1.bf16.msra.mxu0 0
    %433 = vmatprep.subr.bf16.mxu0 0
    %434 = vmatpush1.bf16.msra.mxu0 0
    %435 = vmatprep.mubr.bf16.mxu0 0
    %436 = vmatmul.mubr.bf16.gmra.mrb[0].mxu0 %v66
    %v437 = vpop.f32.mrb[0].mxu0
    %v438 = vadd.f32 %v57, %v437
    %v439 = vpop.f32.mrb[0].mxu0
    %v440 = vpop.f32.mrb[0].mxu0
    %v441 = vadd.f32 %v62, %v440
    %v442 = vpop.f32.mrb[0].mxu0
    %443 = vdwg.mxu0
    %vm444 = vcmp.ge.f32.partialorder %v438, 0.0
    %vm445 = vcmp.ge.f32.partialorder %v441, 0.0
    %v446 = vmul.f32 %v115, %v438
    %v447 = vmul.f32 %v115, %v441
    %v448 = vsel %vm444, %v438, %v446
    %v449 = vsel %vm445, %v441, %v447
    %v450 = vsel %vm120, %v448, 0.0
    %v451 = vsel %vm120, %v449, 0.0
    %v452 = vadd.f32 %v450, %v451
    %453 = vadd.xlane.f32.xlu0 %v452
    %v454 = vpop.xlane.xlu0 %453
    %v455 = vrot.slane %v454, 4
    %v456 = vadd.f32 %v454, %v455
    %v457 = vrot.slane %v456, 2
    %v458 = vadd.f32 %v456, %v457
    %v459 = vrot.slane %v458, 1
    %v460 = vadd.f32 %v458, %v459
    %s461 = vtos %v460
    %s462 = smul.f32 %s461, 0.001953125
    %v463 = vstv %s462
    %v464 = vsub.f32 %v448, %v463
    %v465 = vsub.f32 %v449, %v463
    %v466 = vmul.f32 %v464, %v464
    %v467 = vmul.f32 %v465, %v465
    %v468 = vsel %vm120, %v466, 0.0
    %v469 = vsel %vm120, %v467, 0.0
    %v470 = vadd.f32 %v468, %v469
    %471 = vadd.xlane.f32.xlu0 %v470
    %v472 = vpop.xlane.xlu0 %471
    %v473 = vrot.slane %v472, 4
    %v474 = vadd.f32 %v472, %v473
    %v475 = vrot.slane %v474, 2
    %v476 = vadd.f32 %v474, %v475
    %v477 = vrot.slane %v476, 1
    %v478 = vadd.f32 %v476, %v477
    %s479 = vtos %v478
    %s480 = smul.f32 %s479, 0.001953125
    %s481 = sadd.f32 %s480, 1e-08
    %v482 = vstv %s481
    %v483 = vrsqrt.pop %v482
    %s484 = vtos %v483
    %v485 = vstv %s484
    %v486 = vmul.f32 %v485, %v47
    %v487 = vmul.f32 %v485, %v48
    %489 = vset.pattern.permute.xlu0 1
    %490 = vperm.xlu0 %489, %v486
    %v491 = vpop.permute.xlu0 %490
    %494 = vset.pattern.permute.xlu0 1
    %495 = vperm.xlu0 %494, %v487
    %v496 = vpop.permute.xlu0 %495
    %v498 = vmul.f32 %v464, %v491
    %v499 = vmul.f32 %v465, %v496
    %v500 = vadd.f32 %v498, %v173
    %v501 = vadd.f32 %v499, %v177
    %s502 = sld [smem:[#allocation5 + $0x12]]
    %s503 = sld [smem:[#allocation5 + $0x11]]
    %s504 = sld [smem:[#allocation5 + $0x13]]
    %v505 = vstv %s502
    %v506 = vmul.f32 %v505, %v500
    %v507 = vmul.f32 %v505, %v501
    %v508 = vstv %s503
    %v509 = vmul.f32 %v508, %v47
    %v510 = vmul.f32 %v508, %v48
    %v511 = vrot.slane %v500, 7
    %v512 = vrot.slane %v501, 7
    %v513 = vsel %vm194, %v511, %v512
    %v514 = vsel %vm194, %v512, %v511
    %516 = vset.pattern.permute.xlu0 6
    %517 = vperm.xlu0 %516, %v509
    %v518 = vpop.permute.xlu0 %517
    %521 = vset.pattern.permute.xlu0 6
    %522 = vperm.xlu0 %521, %v510
    %v523 = vpop.permute.xlu0 %522
    %v525 = vmul.f32 %v518, %v514
    %v526 = vmul.f32 %v523, %v513
    %v527 = vadd.f32 %v506, %v525
    %v528 = vadd.f32 %v507, %v526
    %v529 = vstv %s504
    %v530 = vmul.f32 %v529, %v47
    %v531 = vmul.f32 %v529, %v48
    %v532 = vrot.slane %v500, 1
    %v533 = vrot.slane %v501, 1
    %v534 = vsel %vm216, %v532, %v533
    %v535 = vsel %vm216, %v533, %v532
    %537 = vset.pattern.permute.xlu0 7
    %538 = vperm.xlu0 %537, %v530
    %v539 = vpop.permute.xlu0 %538
    %542 = vset.pattern.permute.xlu0 7
    %543 = vperm.xlu0 %542, %v531
    %v544 = vpop.permute.xlu0 %543
    %v546 = vmul.f32 %v539, %v534
    %v547 = vmul.f32 %v544, %v535
    %v548 = vadd.f32 %v527, %v546
    %v549 = vadd.f32 %v528, %v547
    %v550 = vld [vmem:[#allocation2] sm:$0xff]
    %v551 = vld [vmem:[#allocation2 + $0x8] sm:$0xff]
    %v552 = vadd.f32 %v550, %v548
    %v553 = vadd.f32 %v551, %v549
    %554 = vst.msk [vmem:[#allocation2] sm:$0xff] %vm120, %v552
    %555 = vst.msk [vmem:[#allocation2 + $0x8] sm:$0xff] %vm120, %v553
    %s556 = scalar_lea.vmem %s1, 24
    %v557 = vld [vmem:[%s556] sm:$0xff]
    %v558 = vpack.c.bf16 %v557, %v557
    %v560 = vsel %vm68, %v558, 0
    %562 = vmatprep.subr.bf16.mxu0 0
    %563 = vmatpush1.bf16.msra.mxu0 %v560
    %564 = vmatprep.subr.bf16.mxu0 0
    %565 = vmatpush1.bf16.msra.mxu0 0
    %566 = vmatprep.subr.bf16.mxu0 0
    %567 = vmatpush1.bf16.msra.mxu0 0
    %568 = vmatprep.subr.bf16.mxu0 0
    %569 = vmatpush1.bf16.msra.mxu0 0
    %570 = vmatprep.subr.bf16.mxu0 0
    %571 = vmatpush1.bf16.msra.mxu0 0
    %572 = vmatprep.subr.bf16.mxu0 0
    %573 = vmatpush1.bf16.msra.mxu0 0
    %574 = vmatprep.subr.bf16.mxu0 0
    %575 = vmatpush1.bf16.msra.mxu0 0
    %576 = vmatprep.subr.bf16.mxu0 0
    %577 = vmatpush1.bf16.msra.mxu0 0
    %578 = vmatprep.subr.bf16.mxu0 0
    %579 = vmatpush1.bf16.msra.mxu0 0
    %580 = vmatprep.subr.bf16.mxu0 0
    %581 = vmatpush1.bf16.msra.mxu0 0
    %582 = vmatprep.subr.bf16.mxu0 0
    %583 = vmatpush1.bf16.msra.mxu0 0
    %584 = vmatprep.subr.bf16.mxu0 0
    %585 = vmatpush1.bf16.msra.mxu0 0
    %586 = vmatprep.subr.bf16.mxu0 0
    %587 = vmatpush1.bf16.msra.mxu0 0
    %588 = vmatprep.subr.bf16.mxu0 0
    %589 = vmatpush1.bf16.msra.mxu0 0
    %590 = vmatprep.subr.bf16.mxu0 0
    %591 = vmatpush1.bf16.msra.mxu0 0
    %592 = vmatprep.subr.bf16.mxu0 0
    %593 = vmatpush1.bf16.msra.mxu0 0
    %594 = vmatprep.mubr.bf16.mxu0 0
    %595 = vmatmul.mubr.bf16.gmra.mrb[0].mxu0 %v66
    %v596 = vpop.f32.mrb[0].mxu0
    %v597 = vadd.f32 %v57, %v596
    %v598 = vpop.f32.mrb[0].mxu0
    %v599 = vpop.f32.mrb[0].mxu0
    %v600 = vadd.f32 %v62, %v599
    %v601 = vpop.f32.mrb[0].mxu0
    %602 = vdwg.mxu0
    %vm603 = vcmp.ge.f32.partialorder %v597, 0.0
    %vm604 = vcmp.ge.f32.partialorder %v600, 0.0
    %v605 = vmul.f32 %v115, %v597
    %v606 = vmul.f32 %v115, %v600
    %v607 = vsel %vm603, %v597, %v605
    %v608 = vsel %vm604, %v600, %v606
    %v609 = vsel %vm120, %v607, 0.0
    %v610 = vsel %vm120, %v608, 0.0
    %v611 = vadd.f32 %v609, %v610
    %612 = vadd.xlane.f32.xlu0 %v611
    %v613 = vpop.xlane.xlu0 %612
    %v614 = vrot.slane %v613, 4
    %v615 = vadd.f32 %v613, %v614
    %v616 = vrot.slane %v615, 2
    %v617 = vadd.f32 %v615, %v616
    %v618 = vrot.slane %v617, 1
    %v619 = vadd.f32 %v617, %v618
    %s620 = vtos %v619
    %s621 = smul.f32 %s620, 0.001953125
    %v622 = vstv %s621
    %v623 = vsub.f32 %v607, %v622
    %v624 = vsub.f32 %v608, %v622
    %v625 = vmul.f32 %v623, %v623
    %v626 = vmul.f32 %v624, %v624
    %v627 = vsel %vm120, %v625, 0.0
    %v628 = vsel %vm120, %v626, 0.0
    %v629 = vadd.f32 %v627, %v628
    %630 = vadd.xlane.f32.xlu0 %v629
    %v631 = vpop.xlane.xlu0 %630
    %v632 = vrot.slane %v631, 4
    %v633 = vadd.f32 %v631, %v632
    %v634 = vrot.slane %v633, 2
    %v635 = vadd.f32 %v633, %v634
    %v636 = vrot.slane %v635, 1
    %v637 = vadd.f32 %v635, %v636
    %s638 = vtos %v637
    %s639 = smul.f32 %s638, 0.001953125
    %s640 = sadd.f32 %s639, 1e-08
    %v641 = vstv %s640
    %v642 = vrsqrt.pop %v641
    %s643 = vtos %v642
    %v644 = vstv %s643
    %v645 = vmul.f32 %v644, %v47
    %v646 = vmul.f32 %v644, %v48
    %648 = vset.pattern.permute.xlu0 1
    %649 = vperm.xlu0 %648, %v645
    %v650 = vpop.permute.xlu0 %649
    %653 = vset.pattern.permute.xlu0 1
    %654 = vperm.xlu0 %653, %v646
    %v655 = vpop.permute.xlu0 %654
    %v657 = vmul.f32 %v623, %v650
    %v658 = vmul.f32 %v624, %v655
    %v659 = vadd.f32 %v657, %v173
    %v660 = vadd.f32 %v658, %v177
    %s661 = sld [smem:[#allocation5 + $0x15]]
    %s662 = sld [smem:[#allocation5 + $0x14]]
    %s663 = sld [smem:[#allocation5 + $0x16]]
    %v664 = vstv %s661
    %v665 = vmul.f32 %v664, %v659
    %v666 = vmul.f32 %v664, %v660
    %v667 = vstv %s662
    %v668 = vmul.f32 %v667, %v47
    %v669 = vmul.f32 %v667, %v48
    %v670 = vrot.slane %v659, 7
    %v671 = vrot.slane %v660, 7
    %v672 = vsel %vm194, %v670, %v671
    %v673 = vsel %vm194, %v671, %v670
    %675 = vset.pattern.permute.xlu0 6
    %676 = vperm.xlu0 %675, %v668
    %v677 = vpop.permute.xlu0 %676
    %680 = vset.pattern.permute.xlu0 6
    %681 = vperm.xlu0 %680, %v669
    %v682 = vpop.permute.xlu0 %681
    %v684 = vmul.f32 %v677, %v673
    %v685 = vmul.f32 %v682, %v672
    %v686 = vadd.f32 %v665, %v684
    %v687 = vadd.f32 %v666, %v685
    %v688 = vstv %s663
    %v689 = vmul.f32 %v688, %v47
    %v690 = vmul.f32 %v688, %v48
    %v691 = vrot.slane %v659, 1
    %v692 = vrot.slane %v660, 1
    %v693 = vsel %vm216, %v691, %v692
    %v694 = vsel %vm216, %v692, %v691
    %696 = vset.pattern.permute.xlu0 7
    %697 = vperm.xlu0 %696, %v689
    %v698 = vpop.permute.xlu0 %697
    %701 = vset.pattern.permute.xlu0 7
    %702 = vperm.xlu0 %701, %v690
    %v703 = vpop.permute.xlu0 %702
    %v705 = vmul.f32 %v698, %v693
    %v706 = vmul.f32 %v703, %v694
    %v707 = vadd.f32 %v686, %v705
    %v708 = vadd.f32 %v687, %v706
    %v709 = vld [vmem:[#allocation2] sm:$0xff]
    %v710 = vld [vmem:[#allocation2 + $0x8] sm:$0xff]
    %v711 = vadd.f32 %v709, %v707
    %v712 = vadd.f32 %v710, %v708
    %713 = vst.msk [vmem:[#allocation2] sm:$0xff] %vm120, %v711
    %714 = vst.msk [vmem:[#allocation2 + $0x8] sm:$0xff] %vm120, %v712
    %v715 = vld [vmem:[#allocation2] sm:$0xff]
    %v716 = vld [vmem:[#allocation2 + $0x8] sm:$0xff]
    %vm717 = vcmp.ge.f32.partialorder %v715, 0.0
    %vm718 = vcmp.ge.f32.partialorder %v716, 0.0
    %v719 = vmul.f32 %v115, %v715
    %v720 = vmul.f32 %v115, %v716
    %v721 = vsel %vm717, %v715, %v719
    %v722 = vsel %vm718, %v716, %v720
    %v723 = vsel %vm120, %v721, 0.0
    %v724 = vsel %vm120, %v722, 0.0
    %v725 = vadd.f32 %v723, %v724
    %726 = vadd.xlane.f32.xlu0 %v725
    %v727 = vpop.xlane.xlu0 %726
    %v728 = vrot.slane %v727, 4
    %v729 = vadd.f32 %v727, %v728
    %v730 = vrot.slane %v729, 2
    %v731 = vadd.f32 %v729, %v730
    %v732 = vrot.slane %v731, 1
    %v733 = vadd.f32 %v731, %v732
    %s734 = vtos %v733
    %s735 = smul.f32 %s734, 0.001953125
    %v736 = vstv %s735
    %v737 = vsub.f32 %v721, %v736
    %v738 = vsub.f32 %v722, %v736
    %v739 = vmul.f32 %v737, %v737
    %v740 = vmul.f32 %v738, %v738
    %v741 = vsel %vm120, %v739, 0.0
    %v742 = vsel %vm120, %v740, 0.0
    %v743 = vadd.f32 %v741, %v742
    %744 = vadd.xlane.f32.xlu0 %v743
    %v745 = vpop.xlane.xlu0 %744
    %v746 = vrot.slane %v745, 4
    %v747 = vadd.f32 %v745, %v746
    %v748 = vrot.slane %v747, 2
    %v749 = vadd.f32 %v747, %v748
    %v750 = vrot.slane %v749, 1
    %v751 = vadd.f32 %v749, %v750
    %s752 = vtos %v751
    %s753 = smul.f32 %s752, 0.001953125
    %s754 = sadd.f32 %s753, 1e-08
    %v755 = vstv %s754
    %v756 = vrsqrt.pop %v755
    %s757 = vtos %v756
    %v758 = vstv %s757
    %v759 = vmul.f32 %v758, %v47
    %v760 = vmul.f32 %v758, %v48
    %762 = vset.pattern.permute.xlu0 1
    %763 = vperm.xlu0 %762, %v759
    %v764 = vpop.permute.xlu0 %763
    %767 = vset.pattern.permute.xlu0 1
    %768 = vperm.xlu0 %767, %v760
    %v769 = vpop.permute.xlu0 %768
    %v771 = vmul.f32 %v737, %v764
    %v772 = vmul.f32 %v738, %v769
    %v773 = vadd.f32 %v771, %v173
    %v774 = vadd.f32 %v772, %v177
    %vm775 = vcmask 7168
    %776 = vst.msk [vmem:[#allocation3] sm:$0xff] %vm775, 0.0
    %777 = vst.msk [vmem:[#allocation3 + $0x8] sm:$0xff] %vm775, 0.0
    %vm778 = vcmask 277768
    %779 = vst.msk [vmem:[#allocation3] sm:$0xff] %vm778, 0.0
    %780 = vst.msk [vmem:[#allocation3 + $0x8] sm:$0xff] %vm778, 0.0
    %783 = vrot.lane.b32.xlu0 %v773, 1
    %v784 = vpop.permute.xlu0 %783
    %785 = vrot.lane.b32.xlu0 %v774, 1
    %v786 = vpop.permute.xlu0 %785
    %vm789 = vcmask 269320
    %790 = vst.msk [vmem:[#allocation3] sm:$0xff] %vm789, %v784
    %791 = vst.msk [vmem:[#allocation3 + $0x8] sm:$0xff] %vm789, %v786
    %v792 = vld [vmem:[%s4] sm:$0xff]
    %v793 = vld [vmem:[%s4 + $0x8] sm:$0xff]
    %v794 = vld [vmem:[#allocation3] sm:$0xff]
    %v795 = vld [vmem:[#allocation3 + $0x8] sm:$0xff]
    %797 = vset.pattern.permute.xlu0 0
    %798 = vperm.xlu0 %797, %v792
    %v799 = vpop.permute.xlu0 %798
    %802 = vset.pattern.permute.xlu0 0
    %803 = vperm.xlu0 %802, %v793
    %v804 = vpop.permute.xlu0 %803
    %v806 = vmul.f32 %v799, %v794
    %v807 = vmul.f32 %v804, %v795
    %808 = vset.pattern.permute.xlu0 3
    %809 = vperm.xlu0 %808, %v47
    %v810 = vpop.permute.xlu0 %809
    %812 = vset.pattern.permute.xlu0 3
    %813 = vperm.xlu0 %812, %v48
    %v814 = vpop.permute.xlu0 %813
    %v816 = vadd.f32 %v806, %v810
    %v817 = vadd.f32 %v807, %v814
    %818 = vst.msk [vmem:[#allocation4] sm:$0xff] %vm120, %v816
    %819 = vst.msk [vmem:[#allocation4 + $0x8] sm:$0xff] %vm120, %v817
    %v820 = vld [vmem:[#allocation4] sm:$0xff]
    %v821 = vld [vmem:[#allocation4 + $0x8] sm:$0xff]
    %v822 = vld [vmem:[%s4] sm:$0xff]
    %v823 = vld [vmem:[%s4 + $0x8] sm:$0xff]
    %v824 = vld [vmem:[#allocation3] sm:$0xff]
    %v825 = vld [vmem:[#allocation3 + $0x8] sm:$0xff]
    %827 = vset.pattern.permute.xlu0 1
    %828 = vperm.xlu0 %827, %v822
    %v829 = vpop.permute.xlu0 %828
    %832 = vset.pattern.permute.xlu0 1
    %833 = vperm.xlu0 %832, %v823
    %v834 = vpop.permute.xlu0 %833
    %v836 = vmul.f32 %v829, %v824
    %v837 = vmul.f32 %v834, %v825
    %840 = vrot.lane.b32.xlu0 %v836, 127
    %v841 = vpop.permute.xlu0 %840
    %842 = vrot.lane.b32.xlu0 %v837, 127
    %v843 = vpop.permute.xlu0 %842
    %v846 = vadd.f32 %v820, %v841
    %v847 = vadd.f32 %v821, %v843
    %848 = vst.msk [vmem:[#allocation4] sm:$0xff] %vm120, %v846
    %849 = vst.msk [vmem:[#allocation4 + $0x8] sm:$0xff] %vm120, %v847
    %v850 = vld [vmem:[#allocation4] sm:$0xff]
    %v851 = vld [vmem:[#allocation4 + $0x8] sm:$0xff]
    %v852 = vld [vmem:[%s4] sm:$0xff]
    %v853 = vld [vmem:[%s4 + $0x8] sm:$0xff]
    %v854 = vld [vmem:[#allocation3] sm:$0xff]
    %v855 = vld [vmem:[#allocation3 + $0x8] sm:$0xff]
    %857 = vset.pattern.permute.xlu0 2
    %858 = vperm.xlu0 %857, %v852
    %v859 = vpop.permute.xlu0 %858
    %862 = vset.pattern.permute.xlu0 2
    %863 = vperm.xlu0 %862, %v853
    %v864 = vpop.permute.xlu0 %863
    %v866 = vmul.f32 %v859, %v854
    %v867 = vmul.f32 %v864, %v855
    %870 = vrot.lane.b32.xlu0 %v866, 126
    %v871 = vpop.permute.xlu0 %870
    %872 = vrot.lane.b32.xlu0 %v867, 126
    %v873 = vpop.permute.xlu0 %872
    %v876 = vadd.f32 %v850, %v871
    %v877 = vadd.f32 %v851, %v873
    %878 = vst.msk [vmem:[#allocation4] sm:$0xff] %vm120, %v876
    %879 = vst.msk [vmem:[#allocation4 + $0x8] sm:$0xff] %vm120, %v877
    %v880 = vld [vmem:[#allocation4] sm:$0xff]
    %v881 = vld [vmem:[#allocation4 + $0x8] sm:$0xff]
    %vm882 = vcmp.ge.f32.partialorder %v880, 0.0
    %vm883 = vcmp.ge.f32.partialorder %v881, 0.0
    %v884 = vstv %s45
    %v885 = vmul.f32 %v884, %v880
    %v886 = vmul.f32 %v884, %v881
    %v887 = vsel %vm882, %v880, %v885
    %v888 = vsel %vm883, %v881, %v886
    %v889 = vsel %vm120, %v887, 0.0
    %v890 = vsel %vm120, %v888, 0.0
    %v891 = vadd.f32 %v889, %v890
    %892 = vadd.xlane.f32.xlu0 %v891
    %v893 = vpop.xlane.xlu0 %892
    %v894 = vrot.slane %v893, 4
    %v895 = vadd.f32 %v893, %v894
    %v896 = vrot.slane %v895, 2
    %v897 = vadd.f32 %v895, %v896
    %v898 = vrot.slane %v897, 1
    %v899 = vadd.f32 %v897, %v898
    %s900 = vtos %v899
    %s901 = smul.f32 %s900, 0.001953125
    %v902 = vstv %s901
    %v903 = vsub.f32 %v887, %v902
    %v904 = vsub.f32 %v888, %v902
    %v905 = vmul.f32 %v903, %v903
    %v906 = vmul.f32 %v904, %v904
    %v907 = vsel %vm120, %v905, 0.0
    %v908 = vsel %vm120, %v906, 0.0
    %v909 = vadd.f32 %v907, %v908
    %910 = vadd.xlane.f32.xlu0 %v909
    %v911 = vpop.xlane.xlu0 %910
    %v912 = vrot.slane %v911, 4
    %v913 = vadd.f32 %v911, %v912
    %v914 = vrot.slane %v913, 2
    %v915 = vadd.f32 %v913, %v914
    %v916 = vrot.slane %v915, 1
    %v917 = vadd.f32 %v915, %v916
    %s918 = vtos %v917
    %s919 = smul.f32 %s918, 0.001953125
    %s920 = sadd.f32 %s919, 1e-08
    %v921 = vstv %s920
    %v922 = vrsqrt.pop %v921
    %s923 = vtos %v922
    %v924 = vstv %s923
    %v925 = vmul.f32 %v924, %v47
    %v926 = vmul.f32 %v924, %v48
    %928 = vset.pattern.permute.xlu0 4
    %929 = vperm.xlu0 %928, %v925
    %v930 = vpop.permute.xlu0 %929
    %933 = vset.pattern.permute.xlu0 4
    %934 = vperm.xlu0 %933, %v926
    %v935 = vpop.permute.xlu0 %934
    %v937 = vmul.f32 %v903, %v930
    %v938 = vmul.f32 %v904, %v935
    %939 = vset.pattern.permute.xlu0 5
    %940 = vperm.xlu0 %939, %v47
    %v941 = vpop.permute.xlu0 %940
    %943 = vset.pattern.permute.xlu0 5
    %944 = vperm.xlu0 %943, %v48
    %v945 = vpop.permute.xlu0 %944
    %v947 = vadd.f32 %v937, %v941
    %v948 = vadd.f32 %v938, %v945
    %949 = vst.msk [vmem:[#allocation4] sm:$0xff] %vm120, %v947
    %950 = vst.msk [vmem:[#allocation4 + $0x8] sm:$0xff] %vm120, %v948
    %v951 = vld [vmem:[%s5] sm:$0xff]
    %v952 = vld [vmem:[%s5 + $0x8] sm:$0xff]
    %v953 = vpack.c.bf16 %v952, %v951
    %v954 = vld [vmem:[%s6] sm:$0xff]
    %v955 = vld [vmem:[%s6 + $0x8] sm:$0xff]
    %s956 = sld [smem:[#allocation5 + $0x3]]
    %v957 = vld [vmem:[#allocation4] sm:$0xff]
    %v958 = vld [vmem:[#allocation4 + $0x8] sm:$0xff]
    %v959 = vstv %s956
    %v960 = vmul.f32 %v959, %v957
    %v961 = vmul.f32 %v959, %v958
    %s962 = sld [smem:[#allocation5 + $0x7]]
    %v963 = vstv %s962
    %v964 = vadd.f32 %v960, %v963
    %v965 = vadd.f32 %v961, %v963
    %vm966 = vcmp.ge.f32.partialorder %v964, 0.0
    %vm967 = vcmp.ge.f32.partialorder %v965, 0.0
    %v968 = vmul.f32 %v115, %v964
    %v969 = vmul.f32 %v115, %v965
    %v970 = vsel %vm966, %v964, %v968
    %v971 = vsel %vm967, %v965, %v969
    %v972 = vsel %vm120, %v970, 0.0
    %v973 = vsel %vm120, %v971, 0.0
    %v974 = vadd.f32 %v972, %v973
    %975 = vadd.xlane.f32.xlu0 %v974
    %v976 = vpop.xlane.xlu0 %975
    %v977 = vrot.slane %v976, 4
    %v978 = vadd.f32 %v976, %v977
    %v979 = vrot.slane %v978, 2
    %v980 = vadd.f32 %v978, %v979
    %v981 = vrot.slane %v980, 1
    %v982 = vadd.f32 %v980, %v981
    %s983 = vtos %v982
    %s984 = smul.f32 %s983, 0.001953125
    %v985 = vstv %s984
    %v986 = vsub.f32 %v970, %v985
    %v987 = vsub.f32 %v971, %v985
    %v988 = vmul.f32 %v986, %v986
    %v989 = vmul.f32 %v987, %v987
    %v990 = vsel %vm120, %v988, 0.0
    %v991 = vsel %vm120, %v989, 0.0
    %v992 = vadd.f32 %v990, %v991
    %993 = vadd.xlane.f32.xlu0 %v992
    %v994 = vpop.xlane.xlu0 %993
    %v995 = vrot.slane %v994, 4
    %v996 = vadd.f32 %v994, %v995
    %v997 = vrot.slane %v996, 2
    %v998 = vadd.f32 %v996, %v997
    %v999 = vrot.slane %v998, 1
    %v1000 = vadd.f32 %v998, %v999
    %s1001 = vtos %v1000
    %s1002 = smul.f32 %s1001, 0.001953125
    %s1003 = sadd.f32 %s1002, 1e-08
    %v1004 = vstv %s1003
    %v1005 = vrsqrt.pop %v1004
    %s1006 = vtos %v1005
    %v1007 = vstv %s1006
    %v1008 = vmul.f32 %v1007, %v47
    %v1009 = vmul.f32 %v1007, %v48
    %1011 = vset.pattern.permute.xlu0 1
    %1012 = vperm.xlu0 %1011, %v1008
    %v1013 = vpop.permute.xlu0 %1012
    %1016 = vset.pattern.permute.xlu0 1
    %1017 = vperm.xlu0 %1016, %v1009
    %v1018 = vpop.permute.xlu0 %1017
    %v1020 = vmul.f32 %v986, %v1013
    %v1021 = vmul.f32 %v987, %v1018
    %v1022 = vadd.f32 %v1020, %v173
    %v1023 = vadd.f32 %v1021, %v177
    %v1024 = vpack.c.bf16 %v1023, %v1022
    %1026 = vset.pattern.permute.xlu0 0
    %1027 = vperm.xlu0 %1026, %v954
    %v1028 = vpop.permute.xlu0 %1027
    %1031 = vset.pattern.permute.xlu0 0
    %1032 = vperm.xlu0 %1031, %v955
    %v1033 = vpop.permute.xlu0 %1032
    %vm1035 = vcmask 130048
    %v1037 = vsel %vm1035, %v953, 0
    %1039 = vmatprep.subr.bf16.mxu0 0
    %1040 = vmatpush1.bf16.msra.mxu0 %v1024
    %1041 = vmatprep.subr.bf16.mxu0 0
    %1042 = vmatpush1.bf16.msra.mxu0 0
    %1043 = vmatprep.subr.bf16.mxu0 0
    %1044 = vmatpush1.bf16.msra.mxu0 0
    %1045 = vmatprep.subr.bf16.mxu0 0
    %1046 = vmatpush1.bf16.msra.mxu0 0
    %1047 = vmatprep.subr.bf16.mxu0 0
    %1048 = vmatpush1.bf16.msra.mxu0 0
    %1049 = vmatprep.subr.bf16.mxu0 0
    %1050 = vmatpush1.bf16.msra.mxu0 0
    %1051 = vmatprep.subr.bf16.mxu0 0
    %1052 = vmatpush1.bf16.msra.mxu0 0
    %1053 = vmatprep.subr.bf16.mxu0 0
    %1054 = vmatpush1.bf16.msra.mxu0 0
    %1055 = vmatprep.subr.bf16.mxu0 0
    %1056 = vmatpush1.bf16.msra.mxu0 0
    %1057 = vmatprep.subr.bf16.mxu0 0
    %1058 = vmatpush1.bf16.msra.mxu0 0
    %1059 = vmatprep.subr.bf16.mxu0 0
    %1060 = vmatpush1.bf16.msra.mxu0 0
    %1061 = vmatprep.subr.bf16.mxu0 0
    %1062 = vmatpush1.bf16.msra.mxu0 0
    %1063 = vmatprep.subr.bf16.mxu0 0
    %1064 = vmatpush1.bf16.msra.mxu0 0
    %1065 = vmatprep.subr.bf16.mxu0 0
    %1066 = vmatpush1.bf16.msra.mxu0 0
    %1067 = vmatprep.subr.bf16.mxu0 0
    %1068 = vmatpush1.bf16.msra.mxu0 0
    %1069 = vmatprep.subr.bf16.mxu0 0
    %1070 = vmatpush1.bf16.msra.mxu0 0
    %1071 = vmatprep.mubr.bf16.mxu0 0
    %1072 = vmatmul.mubr.bf16.gmra.mrb[0].mxu0 %v1037
    %v1073 = vpop.f32.mrb[0].mxu0
    %v1074 = vadd.f32 %v1028, %v1073
    %v1075 = vpop.f32.mrb[0].mxu0
    %v1076 = vpop.f32.mrb[0].mxu0
    %v1077 = vadd.f32 %v1033, %v1076
    %v1078 = vpop.f32.mrb[0].mxu0
    %1079 = vdwg.mxu0
    %1080 = vst.msk [vmem:[#allocation8] sm:$0xff] %vm120, %v1074
    %1081 = vst.msk [vmem:[#allocation9] sm:$0xff] %vm120, %v1077
    %s1082 = sld [smem:[#allocation5 + $0x4]]
    %v1083 = vld [vmem:[#allocation4] sm:$0xff]
    %v1084 = vld [vmem:[#allocation4 + $0x8] sm:$0xff]
    %v1085 = vstv %s1082
    %v1086 = vmul.f32 %v1085, %v1083
    %v1087 = vmul.f32 %v1085, %v1084
    %s1088 = sld [smem:[#allocation5 + $0x8]]
    %v1089 = vstv %s1088
    %v1090 = vadd.f32 %v1086, %v1089
    %v1091 = vadd.f32 %v1087, %v1089
    %vm1092 = vcmp.ge.f32.partialorder %v1090, 0.0
    %vm1093 = vcmp.ge.f32.partialorder %v1091, 0.0
    %v1094 = vmul.f32 %v115, %v1090
    %v1095 = vmul.f32 %v115, %v1091
    %v1096 = vsel %vm1092, %v1090, %v1094
    %v1097 = vsel %vm1093, %v1091, %v1095
    %v1098 = vsel %vm120, %v1096, 0.0
    %v1099 = vsel %vm120, %v1097, 0.0
    %v1100 = vadd.f32 %v1098, %v1099
    %1101 = vadd.xlane.f32.xlu0 %v1100
    %v1102 = vpop.xlane.xlu0 %1101
    %v1103 = vrot.slane %v1102, 4
    %v1104 = vadd.f32 %v1102, %v1103
    %v1105 = vrot.slane %v1104, 2
    %v1106 = vadd.f32 %v1104, %v1105
    %v1107 = vrot.slane %v1106, 1
    %v1108 = vadd.f32 %v1106, %v1107
    %s1109 = vtos %v1108
    %s1110 = smul.f32 %s1109, 0.001953125
    %v1111 = vstv %s1110
    %v1112 = vsub.f32 %v1096, %v1111
    %v1113 = vsub.f32 %v1097, %v1111
    %v1114 = vmul.f32 %v1112, %v1112
    %v1115 = vmul.f32 %v1113, %v1113
    %v1116 = vsel %vm120, %v1114, 0.0
    %v1117 = vsel %vm120, %v1115, 0.0
    %v1118 = vadd.f32 %v1116, %v1117
    %1119 = vadd.xlane.f32.xlu0 %v1118
    %v1120 = vpop.xlane.xlu0 %1119
    %v1121 = vrot.slane %v1120, 4
    %v1122 = vadd.f32 %v1120, %v1121
    %v1123 = vrot.slane %v1122, 2
    %v1124 = vadd.f32 %v1122, %v1123
    %v1125 = vrot.slane %v1124, 1
    %v1126 = vadd.f32 %v1124, %v1125
    %s1127 = vtos %v1126
    %s1128 = smul.f32 %s1127, 0.001953125
    %s1129 = sadd.f32 %s1128, 1e-08
    %v1130 = vstv %s1129
    %v1131 = vrsqrt.pop %v1130
    %s1132 = vtos %v1131
    %v1133 = vstv %s1132
    %v1134 = vmul.f32 %v1133, %v47
    %v1135 = vmul.f32 %v1133, %v48
    %1137 = vset.pattern.permute.xlu0 1
    %1138 = vperm.xlu0 %1137, %v1134
    %v1139 = vpop.permute.xlu0 %1138
    %1142 = vset.pattern.permute.xlu0 1
    %1143 = vperm.xlu0 %1142, %v1135
    %v1144 = vpop.permute.xlu0 %1143
    %v1146 = vmul.f32 %v1112, %v1139
    %v1147 = vmul.f32 %v1113, %v1144
    %v1148 = vadd.f32 %v1146, %v173
    %v1149 = vadd.f32 %v1147, %v177
    %v1150 = vpack.c.bf16 %v1149, %v1148
    %1151 = vmatprep.subr.bf16.mxu0 0
    %1152 = vmatpush1.bf16.msra.mxu0 %v1150
    %1153 = vmatprep.subr.bf16.mxu0 0
    %1154 = vmatpush1.bf16.msra.mxu0 0
    %1155 = vmatprep.subr.bf16.mxu0 0
    %1156 = vmatpush1.bf16.msra.mxu0 0
    %1157 = vmatprep.subr.bf16.mxu0 0
    %1158 = vmatpush1.bf16.msra.mxu0 0
    %1159 = vmatprep.subr.bf16.mxu0 0
    %1160 = vmatpush1.bf16.msra.mxu0 0
    %1161 = vmatprep.subr.bf16.mxu0 0
    %1162 = vmatpush1.bf16.msra.mxu0 0
    %1163 = vmatprep.subr.bf16.mxu0 0
    %1164 = vmatpush1.bf16.msra.mxu0 0
    %1165 = vmatprep.subr.bf16.mxu0 0
    %1166 = vmatpush1.bf16.msra.mxu0 0
    %1167 = vmatprep.subr.bf16.mxu0 0
    %1168 = vmatpush1.bf16.msra.mxu0 0
    %1169 = vmatprep.subr.bf16.mxu0 0
    %1170 = vmatpush1.bf16.msra.mxu0 0
    %1171 = vmatprep.subr.bf16.mxu0 0
    %1172 = vmatpush1.bf16.msra.mxu0 0
    %1173 = vmatprep.subr.bf16.mxu0 0
    %1174 = vmatpush1.bf16.msra.mxu0 0
    %1175 = vmatprep.subr.bf16.mxu0 0
    %1176 = vmatpush1.bf16.msra.mxu0 0
    %1177 = vmatprep.subr.bf16.mxu0 0
    %1178 = vmatpush1.bf16.msra.mxu0 0
    %1179 = vmatprep.subr.bf16.mxu0 0
    %1180 = vmatpush1.bf16.msra.mxu0 0
    %1181 = vmatprep.subr.bf16.mxu0 0
    %1182 = vmatpush1.bf16.msra.mxu0 0
    %1183 = vmatprep.mubr.bf16.mxu0 0
    %1184 = vmatmul.mubr.bf16.gmra.mrb[0].mxu0 %v1037
    %v1185 = vpop.f32.mrb[0].mxu0
    %v1186 = vadd.f32 %v1028, %v1185
    %v1187 = vpop.f32.mrb[0].mxu0
    %v1188 = vpop.f32.mrb[0].mxu0
    %v1189 = vadd.f32 %v1033, %v1188
    %v1190 = vpop.f32.mrb[0].mxu0
    %1191 = vdwg.mxu0
    %s1192 = scalar_lea.vmem [#allocation8], 8
    %1193 = vst.msk [vmem:[%s1192] sm:$0xff] %vm120, %v1186
    %s1194 = scalar_lea.vmem [#allocation9], 8
    %1195 = vst.msk [vmem:[%s1194] sm:$0xff] %vm120, %v1189
    %s1196 = sld [smem:[#allocation5 + $0x5]]
    %v1197 = vld [vmem:[#allocation4] sm:$0xff]
    %v1198 = vld [vmem:[#allocation4 + $0x8] sm:$0xff]
    %v1199 = vstv %s1196
    %v1200 = vmul.f32 %v1199, %v1197
    %v1201 = vmul.f32 %v1199, %v1198
    %s1202 = sld [smem:[#allocation5 + $0x9]]
    %v1203 = vstv %s1202
    %v1204 = vadd.f32 %v1200, %v1203
    %v1205 = vadd.f32 %v1201, %v1203
    %vm1206 = vcmp.ge.f32.partialorder %v1204, 0.0
    %vm1207 = vcmp.ge.f32.partialorder %v1205, 0.0
    %v1208 = vmul.f32 %v115, %v1204
    %v1209 = vmul.f32 %v115, %v1205
    %v1210 = vsel %vm1206, %v1204, %v1208
    %v1211 = vsel %vm1207, %v1205, %v1209
    %v1212 = vsel %vm120, %v1210, 0.0
    %v1213 = vsel %vm120, %v1211, 0.0
    %v1214 = vadd.f32 %v1212, %v1213
    %1215 = vadd.xlane.f32.xlu0 %v1214
    %v1216 = vpop.xlane.xlu0 %1215
    %v1217 = vrot.slane %v1216, 4
    %v1218 = vadd.f32 %v1216, %v1217
    %v1219 = vrot.slane %v1218, 2
    %v1220 = vadd.f32 %v1218, %v1219
    %v1221 = vrot.slane %v1220, 1
    %v1222 = vadd.f32 %v1220, %v1221
    %s1223 = vtos %v1222
    %s1224 = smul.f32 %s1223, 0.001953125
    %v1225 = vstv %s1224
    %v1226 = vsub.f32 %v1210, %v1225
    %v1227 = vsub.f32 %v1211, %v1225
    %v1228 = vmul.f32 %v1226, %v1226
    %v1229 = vmul.f32 %v1227, %v1227
    %v1230 = vsel %vm120, %v1228, 0.0
    %v1231 = vsel %vm120, %v1229, 0.0
    %v1232 = vadd.f32 %v1230, %v1231
    %1233 = vadd.xlane.f32.xlu0 %v1232
    %v1234 = vpop.xlane.xlu0 %1233
    %v1235 = vrot.slane %v1234, 4
    %v1236 = vadd.f32 %v1234, %v1235
    %v1237 = vrot.slane %v1236, 2
    %v1238 = vadd.f32 %v1236, %v1237
    %v1239 = vrot.slane %v1238, 1
    %v1240 = vadd.f32 %v1238, %v1239
    %s1241 = vtos %v1240
    %s1242 = smul.f32 %s1241, 0.001953125
    %s1243 = sadd.f32 %s1242, 1e-08
    %v1244 = vstv %s1243
    %v1245 = vrsqrt.pop %v1244
    %s1246 = vtos %v1245
    %v1247 = vstv %s1246
    %v1248 = vmul.f32 %v1247, %v47
    %v1249 = vmul.f32 %v1247, %v48
    %1251 = vset.pattern.permute.xlu0 1
    %1252 = vperm.xlu0 %1251, %v1248
    %v1253 = vpop.permute.xlu0 %1252
    %1256 = vset.pattern.permute.xlu0 1
    %1257 = vperm.xlu0 %1256, %v1249
    %v1258 = vpop.permute.xlu0 %1257
    %v1260 = vmul.f32 %v1226, %v1253
    %v1261 = vmul.f32 %v1227, %v1258
    %v1262 = vadd.f32 %v1260, %v173
    %v1263 = vadd.f32 %v1261, %v177
    %v1264 = vpack.c.bf16 %v1263, %v1262
    %1265 = vmatprep.subr.bf16.mxu0 0
    %1266 = vmatpush1.bf16.msra.mxu0 %v1264
    %1267 = vmatprep.subr.bf16.mxu0 0
    %1268 = vmatpush1.bf16.msra.mxu0 0
    %1269 = vmatprep.subr.bf16.mxu0 0
    %1270 = vmatpush1.bf16.msra.mxu0 0
    %1271 = vmatprep.subr.bf16.mxu0 0
    %1272 = vmatpush1.bf16.msra.mxu0 0
    %1273 = vmatprep.subr.bf16.mxu0 0
    %1274 = vmatpush1.bf16.msra.mxu0 0
    %1275 = vmatprep.subr.bf16.mxu0 0
    %1276 = vmatpush1.bf16.msra.mxu0 0
    %1277 = vmatprep.subr.bf16.mxu0 0
    %1278 = vmatpush1.bf16.msra.mxu0 0
    %1279 = vmatprep.subr.bf16.mxu0 0
    %1280 = vmatpush1.bf16.msra.mxu0 0
    %1281 = vmatprep.subr.bf16.mxu0 0
    %1282 = vmatpush1.bf16.msra.mxu0 0
    %1283 = vmatprep.subr.bf16.mxu0 0
    %1284 = vmatpush1.bf16.msra.mxu0 0
    %1285 = vmatprep.subr.bf16.mxu0 0
    %1286 = vmatpush1.bf16.msra.mxu0 0
    %1287 = vmatprep.subr.bf16.mxu0 0
    %1288 = vmatpush1.bf16.msra.mxu0 0
    %1289 = vmatprep.subr.bf16.mxu0 0
    %1290 = vmatpush1.bf16.msra.mxu0 0
    %1291 = vmatprep.subr.bf16.mxu0 0
    %1292 = vmatpush1.bf16.msra.mxu0 0
    %1293 = vmatprep.subr.bf16.mxu0 0
    %1294 = vmatpush1.bf16.msra.mxu0 0
    %1295 = vmatprep.subr.bf16.mxu0 0
    %1296 = vmatpush1.bf16.msra.mxu0 0
    %1297 = vmatprep.mubr.bf16.mxu0 0
    %1298 = vmatmul.mubr.bf16.gmra.mrb[0].mxu0 %v1037
    %v1299 = vpop.f32.mrb[0].mxu0
    %v1300 = vadd.f32 %v1028, %v1299
    %v1301 = vpop.f32.mrb[0].mxu0
    %v1302 = vpop.f32.mrb[0].mxu0
    %v1303 = vadd.f32 %v1033, %v1302
    %v1304 = vpop.f32.mrb[0].mxu0
    %1305 = vdwg.mxu0
    %s1306 = scalar_lea.vmem [#allocation8], 16
    %1307 = vst.msk [vmem:[%s1306] sm:$0xff] %vm120, %v1300
    %s1308 = scalar_lea.vmem [#allocation9], 16
    %1309 = vst.msk [vmem:[%s1308] sm:$0xff] %vm120, %v1303
    %s1310 = sld [smem:[#allocation5 + $0x6]]
    %v1311 = vld [vmem:[#allocation4] sm:$0xff]
    %v1312 = vld [vmem:[#allocation4 + $0x8] sm:$0xff]
    %v1313 = vstv %s1310
    %v1314 = vmul.f32 %v1313, %v1311
    %v1315 = vmul.f32 %v1313, %v1312
    %s1316 = sld [smem:[#allocation5 + $0xa]]
    %v1317 = vstv %s1316
    %v1318 = vadd.f32 %v1314, %v1317
    %v1319 = vadd.f32 %v1315, %v1317
    %vm1320 = vcmp.ge.f32.partialorder %v1318, 0.0
    %vm1321 = vcmp.ge.f32.partialorder %v1319, 0.0
    %v1322 = vmul.f32 %v115, %v1318
    %v1323 = vmul.f32 %v115, %v1319
    %v1324 = vsel %vm1320, %v1318, %v1322
    %v1325 = vsel %vm1321, %v1319, %v1323
    %v1326 = vsel %vm120, %v1324, 0.0
    %v1327 = vsel %vm120, %v1325, 0.0
    %v1328 = vadd.f32 %v1326, %v1327
    %1329 = vadd.xlane.f32.xlu0 %v1328
    %v1330 = vpop.xlane.xlu0 %1329
    %v1331 = vrot.slane %v1330, 4
    %v1332 = vadd.f32 %v1330, %v1331
    %v1333 = vrot.slane %v1332, 2
    %v1334 = vadd.f32 %v1332, %v1333
    %v1335 = vrot.slane %v1334, 1
    %v1336 = vadd.f32 %v1334, %v1335
    %s1337 = vtos %v1336
    %s1338 = smul.f32 %s1337, 0.001953125
    %v1339 = vstv %s1338
    %v1340 = vsub.f32 %v1324, %v1339
    %v1341 = vsub.f32 %v1325, %v1339
    %v1342 = vmul.f32 %v1340, %v1340
    %v1343 = vmul.f32 %v1341, %v1341
    %v1344 = vsel %vm120, %v1342, 0.0
    %v1345 = vsel %vm120, %v1343, 0.0
    %v1346 = vadd.f32 %v1344, %v1345
    %1347 = vadd.xlane.f32.xlu0 %v1346
    %v1348 = vpop.xlane.xlu0 %1347
    %v1349 = vrot.slane %v1348, 4
    %v1350 = vadd.f32 %v1348, %v1349
    %v1351 = vrot.slane %v1350, 2
    %v1352 = vadd.f32 %v1350, %v1351
    %v1353 = vrot.slane %v1352, 1
    %v1354 = vadd.f32 %v1352, %v1353
    %s1355 = vtos %v1354
    %s1356 = smul.f32 %s1355, 0.001953125
    %s1357 = sadd.f32 %s1356, 1e-08
    %v1358 = vstv %s1357
    %v1359 = vrsqrt.pop %v1358
    %s1360 = vtos %v1359
    %v1361 = vstv %s1360
    %v1362 = vmul.f32 %v1361, %v47
    %v1363 = vmul.f32 %v1361, %v48
    %1365 = vset.pattern.permute.xlu0 1
    %1366 = vperm.xlu0 %1365, %v1362
    %v1367 = vpop.permute.xlu0 %1366
    %1370 = vset.pattern.permute.xlu0 1
    %1371 = vperm.xlu0 %1370, %v1363
    %v1372 = vpop.permute.xlu0 %1371
    %v1374 = vmul.f32 %v1340, %v1367
    %v1375 = vmul.f32 %v1341, %v1372
    %v1376 = vadd.f32 %v1374, %v173
    %v1377 = vadd.f32 %v1375, %v177
    %v1378 = vpack.c.bf16 %v1377, %v1376
    %1379 = vmatprep.subr.bf16.mxu0 0
    %1380 = vmatpush1.bf16.msra.mxu0 %v1378
    %1381 = vmatprep.subr.bf16.mxu0 0
    %1382 = vmatpush1.bf16.msra.mxu0 0
    %1383 = vmatprep.subr.bf16.mxu0 0
    %1384 = vmatpush1.bf16.msra.mxu0 0
    %1385 = vmatprep.subr.bf16.mxu0 0
    %1386 = vmatpush1.bf16.msra.mxu0 0
    %1387 = vmatprep.subr.bf16.mxu0 0
    %1388 = vmatpush1.bf16.msra.mxu0 0
    %1389 = vmatprep.subr.bf16.mxu0 0
    %1390 = vmatpush1.bf16.msra.mxu0 0
    %1391 = vmatprep.subr.bf16.mxu0 0
    %1392 = vmatpush1.bf16.msra.mxu0 0
    %1393 = vmatprep.subr.bf16.mxu0 0
    %1394 = vmatpush1.bf16.msra.mxu0 0
    %1395 = vmatprep.subr.bf16.mxu0 0
    %1396 = vmatpush1.bf16.msra.mxu0 0
    %1397 = vmatprep.subr.bf16.mxu0 0
    %1398 = vmatpush1.bf16.msra.mxu0 0
    %1399 = vmatprep.subr.bf16.mxu0 0
    %1400 = vmatpush1.bf16.msra.mxu0 0
    %1401 = vmatprep.subr.bf16.mxu0 0
    %1402 = vmatpush1.bf16.msra.mxu0 0
    %1403 = vmatprep.subr.bf16.mxu0 0
    %1404 = vmatpush1.bf16.msra.mxu0 0
    %1405 = vmatprep.subr.bf16.mxu0 0
    %1406 = vmatpush1.bf16.msra.mxu0 0
    %1407 = vmatprep.subr.bf16.mxu0 0
    %1408 = vmatpush1.bf16.msra.mxu0 0
    %1409 = vmatprep.subr.bf16.mxu0 0
    %1410 = vmatpush1.bf16.msra.mxu0 0
    %1411 = vmatprep.mubr.bf16.mxu0 0
    %1412 = vmatmul.mubr.bf16.gmra.mrb[0].mxu0 %v1037
    %v1413 = vpop.f32.mrb[0].mxu0
    %v1414 = vadd.f32 %v1028, %v1413
    %v1415 = vpop.f32.mrb[0].mxu0
    %v1416 = vpop.f32.mrb[0].mxu0
    %v1417 = vadd.f32 %v1033, %v1416
    %v1418 = vpop.f32.mrb[0].mxu0
    %1419 = vdwg.mxu0
    %s1420 = scalar_lea.vmem [#allocation8], 24
    %1421 = vst.msk [vmem:[%s1420] sm:$0xff] %vm120, %v1414
    %s1422 = scalar_lea.vmem [#allocation9], 24
    %1423 = vst.msk [vmem:[%s1422] sm:$0xff] %vm120, %v1417
    // Predicated region
    $region34: #{tpu_custom_call.1} parent=1 // pred_check
      _
    $region35: #{tpu_custom_call.1} parent=1 // pred_check_branch
      %1425 = sbr.rel (0) target = $region37
    $region36: #{tpu_custom_call.1} parent=1 // pred_region
      %s1427 = ssub.s32 512, 512
      %1428 = vsyncadd [#allocation6], %s1427
      %s1429 = sshll.u32 [#allocation8], 4
      %s1430 = int_to_ptr.vmem [resolvable:$true] %s1429
      %1435 = dma.vmem_to_hbm [thread:$0]  %s1430, 512, %s7, [#allocation6], 128, 128, 8
    $region37: #{tpu_custom_call.1} parent=1 // pred_fallthru
      _
    // Predicated region
    $region38: #{tpu_custom_call.1} parent=1 // pred_check
      _
    $region39: #{tpu_custom_call.1} parent=1 // pred_check_branch
      %1437 = sbr.rel (0) target = $region41
    $region40: #{tpu_custom_call.1} parent=1 // pred_region
      %s1439 = ssub.s32 512, 512
      %1440 = vsyncadd [#allocation10], %s1439
      %s1441 = sshll.u32 [#allocation9], 4
      %s1442 = int_to_ptr.vmem [resolvable:$true] %s1441
      %1447 = dma.vmem_to_hbm [thread:$0]  %s1442, 512, %s8, [#allocation10], 128, 128, 8
    $region41: #{tpu_custom_call.1} parent=1 // pred_fallthru
      _
    // Predicated region
    $region42: #{tpu_custom_call.1} parent=1 // pred_check
      _
    $region43: #{tpu_custom_call.1} parent=1 // pred_check_branch
      %1449 = sbr.rel (0) target = $region45
    $region44: #{tpu_custom_call.1} parent=1 // pred_region
      %1450 = dma.done [#allocation6], 512
    $region45: #{tpu_custom_call.1} parent=1 // pred_fallthru
      _
    // Predicated region
    $region46: #{tpu_custom_call.1} parent=1 // pred_check
      _
    $region47: #{tpu_custom_call.1} parent=1 // pred_check_branch
      %1452 = sbr.rel (0) target = $region49
    $region48: #{tpu_custom_call.1} parent=1 // pred_region
      %1453 = dma.done [#allocation10], 512
    $region49: #{tpu_custom_call.1} parent=1 // pred_fallthru
      _
    %1454 = vsyncpa [#allocation6], 1
    %1455 = vsyncpa [#allocation10], 1
    %1456 = vsyncpa [#allocation7], 1

</llo_original>
